<compile_context>
chip_gen: v5e
topology: v5e:2x2
jax: 0.10.0
libtpu: 0.0.40
codegen_flags: <defaults>
</compile_context>

<pallas_src>
import functools
import math

import jax
import jax.numpy as jnp
from jax.experimental import pallas as pl
from jax.experimental.pallas import tpu as pltpu


# ----------------------------- Pallas kernels ------------------------------ #

def _gelu(y):
    # tanh-approx GELU (gelu_new). HF's default erf-based gelu differs <1e-3.
    c = math.sqrt(2.0 / math.pi)
    return 0.5 * y * (1.0 + jnp.tanh(c * (y + 0.044715 * y * y * y)))


def _layernorm(y, g, b, eps):
    mean = jnp.mean(y, axis=-1, keepdims=True)
    var = jnp.mean((y - mean) * (y - mean), axis=-1, keepdims=True)
    return (y - mean) * jax.lax.rsqrt(var + eps) * g + b


def _emb_layernorm_kernel(x_ref, g_ref, b_ref, o_ref, *, eps):
    x = x_ref[0].astype(jnp.float32)                  # [S, H]
    o_ref[0] = _layernorm(x, g_ref[...], b_ref[...], eps).astype(o_ref.dtype)


def _attn_block_kernel(x_ref, bias_ref, wqkv_ref, bqkv_ref, wo_ref, bo_ref,
                       g_ref, b_ref, o_ref, *, num_heads, scale, eps):
    x = x_ref[0].astype(jnp.float32)                  # [S, H]
    S, H = x.shape
    Dh = H // num_heads

    # Fused QKV projection: one MXU pass over the concatenated [H, 3H] weight.
    qkv = jnp.dot(x.astype(jnp.bfloat16), wqkv_ref[...].astype(jnp.bfloat16),
                  preferred_element_type=jnp.float32) + bqkv_ref[...]   # [S,3H]

    attn_bias = bias_ref[0]                           # [1, S] additive, f32

    ctx_heads = []
    for h in range(num_heads):                        # unrolled; NH is small
        q_h = qkv[:, h * Dh:(h + 1) * Dh]
        k_h = qkv[:, H + h * Dh:H + (h + 1) * Dh]
        v_h = qkv[:, 2 * H + h * Dh:2 * H + (h + 1) * Dh]
        # scores [S, S]: contract head_dim directly (no materialized transpose)
        s = jax.lax.dot_general(
            q_h.astype(jnp.bfloat16), k_h.astype(jnp.bfloat16),
            (((1,), (1,)), ((), ())),
            preferred_element_type=jnp.float32) * scale
        s = s + attn_bias                             # mask bias kept in f32
        m = jnp.max(s, axis=-1, keepdims=True)
        p = jnp.exp(s - m)
        denom = jnp.sum(p, axis=-1, keepdims=True)
        p = p * pl.reciprocal(denom, approx=True)     # EUP divide (free slot)
        ctx_heads.append(
            jnp.dot(p.astype(jnp.bfloat16), v_h.astype(jnp.bfloat16),
                    preferred_element_type=jnp.float32))
    ctx = jnp.concatenate(ctx_heads, axis=-1)         # [S, H]

    attn_out = jnp.dot(ctx.astype(jnp.bfloat16),
                       wo_ref[...].astype(jnp.bfloat16),
                       preferred_element_type=jnp.float32) + bo_ref[...]

    # fused residual + LayerNorm (f32 elementwise math)
    o_ref[0] = _layernorm(x + attn_out, g_ref[...], b_ref[...],
                          eps).astype(o_ref.dtype)


def _ffn_block_kernel(h_ref, w1_ref, b1_ref, w2_ref, b2_ref, g_ref, b_ref,
                      o_ref, *, eps):
    h = h_ref[0].astype(jnp.float32)                  # [S, H]
    y = jnp.dot(h.astype(jnp.bfloat16), w1_ref[...].astype(jnp.bfloat16),
                preferred_element_type=jnp.float32) + b1_ref[...]
    y = _gelu(y)                                      # f32 (v5e-safe elementwise)
    y = jnp.dot(y.astype(jnp.bfloat16), w2_ref[...].astype(jnp.bfloat16),
                preferred_element_type=jnp.float32) + b2_ref[...]
    # fused residual + LayerNorm
    o_ref[0] = _layernorm(h + y, g_ref[...], b_ref[...], eps).astype(o_ref.dtype)


# ------------------------------ Pallas wrappers ----------------------------- #

_PARALLEL_B = pltpu.CompilerParams(dimension_semantics=("parallel",))


def _row(v):
    return v.reshape(1, -1)


def emb_layernorm(x, gamma, beta, eps=1e-12):
    B, S, H = x.shape
    return pl.pallas_call(
        functools.partial(_emb_layernorm_kernel, eps=eps),
        out_shape=jax.ShapeDtypeStruct((B, S, H), jnp.float32),
        grid=(B,),
        in_specs=[
            pl.BlockSpec((1, S, H), lambda b: (b, 0, 0)),
            pl.BlockSpec((1, H), lambda b: (0, 0)),
            pl.BlockSpec((1, H), lambda b: (0, 0)),
        ],
        out_specs=pl.BlockSpec((1, S, H), lambda b: (b, 0, 0)),
        compiler_params=_PARALLEL_B,
    )(x, _row(gamma), _row(beta))


def attention_block(x, attn_bias, lp, num_heads, eps=1e-12):
    B, S, H = x.shape
    Dh = H // num_heads
    kernel = functools.partial(_attn_block_kernel, num_heads=num_heads,
                               scale=1.0 / math.sqrt(Dh), eps=eps)
    return pl.pallas_call(
        kernel,
        out_shape=jax.ShapeDtypeStruct((B, S, H), jnp.float32),
        grid=(B,),
        in_specs=[
            pl.BlockSpec((1, S, H), lambda b: (b, 0, 0)),       # x
            pl.BlockSpec((1, 1, S), lambda b: (b, 0, 0)),       # mask bias
            pl.BlockSpec((H, 3 * H), lambda b: (0, 0)),         # wqkv (resident)
            pl.BlockSpec((1, 3 * H), lambda b: (0, 0)),         # bqkv
            pl.BlockSpec((H, H), lambda b: (0, 0)),             # wo
            pl.BlockSpec((1, H), lambda b: (0, 0)),             # bo
            pl.BlockSpec((1, H), lambda b: (0, 0)),             # ln1 gamma
            pl.BlockSpec((1, H), lambda b: (0, 0)),             # ln1 beta
        ],
        out_specs=pl.BlockSpec((1, S, H), lambda b: (b, 0, 0)),
        compiler_params=_PARALLEL_B,
    )(x, attn_bias, lp["wqkv"], _row(lp["bqkv"]), lp["wo"], _row(lp["bo"]),
      _row(lp["ln1_g"]), _row(lp["ln1_b"]))


def ffn_block(h, lp, eps=1e-12):
    B, S, H = h.shape
    I = lp["w1"].shape[1]
    return pl.pallas_call(
        functools.partial(_ffn_block_kernel, eps=eps),
        out_shape=jax.ShapeDtypeStruct((B, S, H), jnp.float32),
        grid=(B,),
        in_specs=[
            pl.BlockSpec((1, S, H), lambda b: (b, 0, 0)),       # h
            pl.BlockSpec((H, I), lambda b: (0, 0)),             # w1 (resident)
            pl.BlockSpec((1, I), lambda b: (0, 0)),             # b1
            pl.BlockSpec((I, H), lambda b: (0, 0)),             # w2
            pl.BlockSpec((1, H), lambda b: (0, 0)),             # b2
            pl.BlockSpec((1, H), lambda b: (0, 0)),             # ln2 gamma
            pl.BlockSpec((1, H), lambda b: (0, 0)),             # ln2 beta
        ],
        out_specs=pl.BlockSpec((1, S, H), lambda b: (b, 0, 0)),
        compiler_params=_PARALLEL_B,
    )(h, lp["w1"], _row(lp["b1"]), lp["w2"], _row(lp["b2"]),
      _row(lp["ln2_g"]), _row(lp["ln2_b"]))


# --------------------------- Parameter construction ------------------------- #

class Config:
    vocab_size = 50
    max_position_embeddings = 64
    type_vocab_size = 2
    hidden_size = 64          # NOTE: sub-128 lane width for this toy config;
    num_hidden_layers = 2     # real BERT dims (768/3072) are lane-dense.
    num_attention_heads = 4
    intermediate_size = 128


def init_params(key, cfg, num_classes):
    std = 0.02

    def normal(key, shape):
        return (std * jax.random.normal(key, shape)).astype(jnp.float32)

    keys = iter(jax.random.split(key, 64))
    H, I = cfg.hidden_size, cfg.intermediate_size
    params = {}

    params["word_emb"] = normal(next(keys), (cfg.vocab_size, H))
    params["pos_emb"] = normal(next(keys), (cfg.max_position_embeddings, H))
    params["type_emb"] = normal(next(keys), (cfg.type_vocab_size, H))
    params["emb_ln_g"] = jnp.ones((H,), jnp.float32)
    params["emb_ln_b"] = jnp.zeros((H,), jnp.float32)

    layers = []
    for _ in range(cfg.num_hidden_layers):
        # wq|wk|wv concatenated into a single [H, 3H] weight (one MXU pass).
        lp = {
            "wqkv": normal(next(keys), (H, 3 * H)),
            "bqkv": jnp.zeros((3 * H,), jnp.float32),
            "wo": normal(next(keys), (H, H)), "bo": jnp.zeros((H,), jnp.float32),
            "ln1_g": jnp.ones((H,), jnp.float32),
            "ln1_b": jnp.zeros((H,), jnp.float32),
            "w1": normal(next(keys), (H, I)), "b1": jnp.zeros((I,), jnp.float32),
            "w2": normal(next(keys), (I, H)), "b2": jnp.zeros((H,), jnp.float32),
            "ln2_g": jnp.ones((H,), jnp.float32),
            "ln2_b": jnp.zeros((H,), jnp.float32),
        }
        layers.append(lp)
    params["layers"] = layers

    params["pooler_w"] = normal(next(keys), (H, H))
    params["pooler_b"] = jnp.zeros((H,), jnp.float32)
    params["cls_w"] = normal(next(keys), (H, num_classes))
    params["cls_b"] = jnp.zeros((num_classes,), jnp.float32)
    return params


# ------------------------------- Model forward ------------------------------ #

def bert_for_sequence_classification(params, cfg, token_idxs, token_type_idxs,
                                     masks=None):
    B, S = token_idxs.shape

    # get_position_idxs: [0..S-1] broadcast over batch
    position_idxs = jnp.broadcast_to(jnp.arange(S, dtype=jnp.int32)[None, :],
                                     (B, S))
    if masks is None:
        masks = jnp.ones((B, S), jnp.float32)
    else:
        masks = masks.astype(jnp.float32)
    # Additive attention-mask bias, precomputed once in f32: [B, 1, S].
    attn_bias = ((1.0 - masks) * (-10000.0))[:, None, :]

    # Embedding gathers stay in plain JAX; sum + LayerNorm fused in Pallas.
    emb = (params["word_emb"][token_idxs]
           + params["pos_emb"][position_idxs]
           + params["type_emb"][token_type_idxs])               # [B, S, H]
    x = emb_layernorm(emb, params["emb_ln_g"], params["emb_ln_b"])
    # dropout after embeddings: identity at inference

    for lp in params["layers"]:
        x = attention_block(x, attn_bias, lp, cfg.num_attention_heads)
        x = ffn_block(x, lp)

    # Pooler + classifier left to XLA per perf review: tiny matmuls
    # ([B,H]x[H,H], [B,H]x[H,num_classes]) gain nothing from Pallas launches.
    first_tok = x[:, 0, :]                                      # [B, H]
    pooled = jnp.tanh(first_tok @ params["pooler_w"] + params["pooler_b"])
    # classification head dropout: identity at inference
    logits = pooled @ params["cls_w"] + params["cls_b"]
    return logits


# ----------------------------------- main ----------------------------------- #

if __name__ == "__main__":
    cfg = Config()
    num_classes = 3
    B, S = 2, 8

    key = jax.random.PRNGKey(0)
    kp, kt, ktt = jax.random.split(key, 3)

    params = init_params(kp, cfg, num_classes)
    token_idxs = jax.random.randint(kt, (B, S), 0, cfg.vocab_size,
                                    dtype=jnp.int32)
    token_type_idxs = jax.random.randint(ktt, (B, S), 0, cfg.type_vocab_size,
                                         dtype=jnp.int32)
    masks = jnp.ones((B, S), jnp.float32)

    forward = jax.jit(
        lambda p, t, tt, m: bert_for_sequence_classification(p, cfg, t, tt, m))
    logits = jax.block_until_ready(forward(params, token_idxs,
                                           token_type_idxs, masks))

    assert logits.shape == (B, num_classes), logits.shape
    assert logits.dtype == jnp.float32
    assert bool(jnp.all(jnp.isfinite(logits)))
    print("KERNEL_OK")
</pallas_src>

<mosaic_0001>
module attributes {stable_mosaic.version = 11 : i64} {
  func.func @_attn_block_kernel(%arg0: i32, %arg1: memref<1x8x64xf32, #tpu.memory_space<vmem>>, %arg2: memref<1x1x8xf32, #tpu.memory_space<vmem>>, %arg3: memref<64x192xf32, #tpu.memory_space<vmem>>, %arg4: memref<1x192xf32, #tpu.memory_space<vmem>>, %arg5: memref<64x64xf32, #tpu.memory_space<vmem>>, %arg6: memref<1x64xf32, #tpu.memory_space<vmem>>, %arg7: memref<1x64xf32, #tpu.memory_space<vmem>>, %arg8: memref<1x64xf32, #tpu.memory_space<vmem>>, %arg9: memref<1x8x64xf32, #tpu.memory_space<vmem>>) attributes {dimension_semantics = [#tpu.dimension_semantics<parallel>], iteration_bounds = array<i64: 2>, scalar_prefetch = 0 : i64, scratch_operands = 0 : i64, tpu.core_type = #tpu.core_type<tc>, window_params = [{transform_indices = @transform_0, window_bounds = array<i64: 1, 8, 64>}, {transform_indices = @transform_1, window_bounds = array<i64: 1, 1, 8>}, {pipeline_mode = #tpu.pipeline_mode<synchronous>, transform_indices = @transform_2, window_bounds = array<i64: 64, 192>}, {pipeline_mode = #tpu.pipeline_mode<synchronous>, transform_indices = @transform_3, window_bounds = array<i64: 1, 192>}, {pipeline_mode = #tpu.pipeline_mode<synchronous>, transform_indices = @transform_4, window_bounds = array<i64: 64, 64>}, {pipeline_mode = #tpu.pipeline_mode<synchronous>, transform_indices = @transform_5, window_bounds = array<i64: 1, 64>}, {pipeline_mode = #tpu.pipeline_mode<synchronous>, transform_indices = @transform_6, window_bounds = array<i64: 1, 64>}, {pipeline_mode = #tpu.pipeline_mode<synchronous>, transform_indices = @transform_7, window_bounds = array<i64: 1, 64>}, {transform_indices = @transform_8, window_bounds = array<i64: 1, 8, 64>}]} {
    %c0 = arith.constant 0 : index
    %c0_0 = arith.constant 0 : index
    %c0_1 = arith.constant 0 : index
    %0 = vector.load %arg1[%c0, %c0_0, %c0_1] : memref<1x8x64xf32, #tpu.memory_space<vmem>>, vector<1x8x64xf32>
    %1 = vector.shape_cast %0 : vector<1x8x64xf32> to vector<8x64xf32>
    %2 = arith.truncf %1 : vector<8x64xf32> to vector<8x64xbf16>
    %c0_2 = arith.constant 0 : index
    %c0_3 = arith.constant 0 : index
    %3 = vector.load %arg3[%c0_2, %c0_3] : memref<64x192xf32, #tpu.memory_space<vmem>>, vector<64x192xf32>
    %4 = arith.truncf %3 : vector<64x192xf32> to vector<64x192xbf16>
    %cst = arith.constant dense<0.000000e+00> : vector<8x192xf32>
    %5 = tpu.matmul %2, %4, %cst {dimension_numbers = #tpu.dot_dimension_numbers<[1], [0], [0], [1], [0, 0, 1, 1], [], []>} : vector<8x64xbf16>, vector<64x192xbf16>, vector<8x192xf32> -> vector<8x192xf32>
    %c0_4 = arith.constant 0 : index
    %c0_5 = arith.constant 0 : index
    %6 = vector.load %arg4[%c0_4, %c0_5] : memref<1x192xf32, #tpu.memory_space<vmem>>, vector<1x192xf32>
    %7 = vector.broadcast %6 : vector<1x192xf32> to vector<8x192xf32>
    %8 = arith.addf %5, %7 : vector<8x192xf32>
    %c0_6 = arith.constant 0 : index
    %c0_7 = arith.constant 0 : index
    %c0_8 = arith.constant 0 : index
    %9 = vector.load %arg2[%c0_6, %c0_7, %c0_8] : memref<1x1x8xf32, #tpu.memory_space<vmem>>, vector<1x1x8xf32>
    %10 = vector.shape_cast %9 : vector<1x1x8xf32> to vector<1x8xf32>
    %11 = vector.extract_strided_slice %8 {offsets = [0, 0], sizes = [8, 16], strides = [1, 1]} : vector<8x192xf32> to vector<8x16xf32>
    %12 = vector.extract_strided_slice %8 {offsets = [0, 64], sizes = [8, 16], strides = [1, 1]} : vector<8x192xf32> to vector<8x16xf32>
    %13 = vector.extract_strided_slice %8 {offsets = [0, 128], sizes = [8, 16], strides = [1, 1]} : vector<8x192xf32> to vector<8x16xf32>
    %14 = arith.truncf %11 : vector<8x16xf32> to vector<8x16xbf16>
    %15 = arith.truncf %12 : vector<8x16xf32> to vector<8x16xbf16>
    %cst_9 = arith.constant dense<0.000000e+00> : vector<8x8xf32>
    %16 = tpu.matmul %14, %15, %cst_9 {dimension_numbers = #tpu.dot_dimension_numbers<[1], [1], [0], [0], [0, 0, 1, 0], [], []>} : vector<8x16xbf16>, vector<8x16xbf16>, vector<8x8xf32> -> vector<8x8xf32>
    %cst_10 = arith.constant 2.500000e-01 : f32
    %17 = vector.broadcast %cst_10 : f32 to vector<8x8xf32>
    %18 = arith.mulf %16, %17 : vector<8x8xf32>
    %19 = vector.broadcast %10 : vector<1x8xf32> to vector<8x8xf32>
    %20 = arith.addf %18, %19 : vector<8x8xf32>
    %cst_11 = arith.constant dense<0xFF800000> : vector<8xf32>
    %21 = vector.multi_reduction <maximumf>, %20, %cst_11 [1] : vector<8x8xf32> to vector<8xf32>
    %22 = vector.shape_cast %21 : vector<8xf32> to vector<8x1xf32>
    %23 = vector.broadcast %22 : vector<8x1xf32> to vector<8x8xf32>
    %24 = arith.subf %20, %23 : vector<8x8xf32>
    %25 = math.exp %24 : vector<8x8xf32>
    %cst_12 = arith.constant dense<0.000000e+00> : vector<8xf32>
    %26 = vector.multi_reduction <add>, %25, %cst_12 [1] : vector<8x8xf32> to vector<8xf32>
    %27 = vector.shape_cast %26 : vector<8xf32> to vector<8x1xf32>
    %28 = tpu.reciprocal %27 {approx = true} : vector<8x1xf32> -> vector<8x1xf32>
    %29 = vector.broadcast %28 : vector<8x1xf32> to vector<8x8xf32>
    %30 = arith.mulf %25, %29 : vector<8x8xf32>
    %31 = arith.truncf %30 : vector<8x8xf32> to vector<8x8xbf16>
    %32 = arith.truncf %13 : vector<8x16xf32> to vector<8x16xbf16>
    %cst_13 = arith.constant dense<0.000000e+00> : vector<8x16xf32>
    %33 = tpu.matmul %31, %32, %cst_13 {dimension_numbers = #tpu.dot_dimension_numbers<[1], [0], [0], [1], [0, 0, 1, 1], [], []>} : vector<8x8xbf16>, vector<8x16xbf16>, vector<8x16xf32> -> vector<8x16xf32>
    %34 = vector.extract_strided_slice %8 {offsets = [0, 16], sizes = [8, 16], strides = [1, 1]} : vector<8x192xf32> to vector<8x16xf32>
    %35 = vector.extract_strided_slice %8 {offsets = [0, 80], sizes = [8, 16], strides = [1, 1]} : vector<8x192xf32> to vector<8x16xf32>
    %36 = vector.extract_strided_slice %8 {offsets = [0, 144], sizes = [8, 16], strides = [1, 1]} : vector<8x192xf32> to vector<8x16xf32>
    %37 = arith.truncf %34 : vector<8x16xf32> to vector<8x16xbf16>
    %38 = arith.truncf %35 : vector<8x16xf32> to vector<8x16xbf16>
    %cst_14 = arith.constant dense<0.000000e+00> : vector<8x8xf32>
    %39 = tpu.matmul %37, %38, %cst_14 {dimension_numbers = #tpu.dot_dimension_numbers<[1], [1], [0], [0], [0, 0, 1, 0], [], []>} : vector<8x16xbf16>, vector<8x16xbf16>, vector<8x8xf32> -> vector<8x8xf32>
    %cst_15 = arith.constant 2.500000e-01 : f32
    %40 = vector.broadcast %cst_15 : f32 to vector<8x8xf32>
    %41 = arith.mulf %39, %40 : vector<8x8xf32>
    %42 = vector.broadcast %10 : vector<1x8xf32> to vector<8x8xf32>
    %43 = arith.addf %41, %42 : vector<8x8xf32>
    %cst_16 = arith.constant dense<0xFF800000> : vector<8xf32>
    %44 = vector.multi_reduction <maximumf>, %43, %cst_16 [1] : vector<8x8xf32> to vector<8xf32>
    %45 = vector.shape_cast %44 : vector<8xf32> to vector<8x1xf32>
    %46 = vector.broadcast %45 : vector<8x1xf32> to vector<8x8xf32>
    %47 = arith.subf %43, %46 : vector<8x8xf32>
    %48 = math.exp %47 : vector<8x8xf32>
    %cst_17 = arith.constant dense<0.000000e+00> : vector<8xf32>
    %49 = vector.multi_reduction <add>, %48, %cst_17 [1] : vector<8x8xf32> to vector<8xf32>
    %50 = vector.shape_cast %49 : vector<8xf32> to vector<8x1xf32>
    %51 = tpu.reciprocal %50 {approx = true} : vector<8x1xf32> -> vector<8x1xf32>
    %52 = vector.broadcast %51 : vector<8x1xf32> to vector<8x8xf32>
    %53 = arith.mulf %48, %52 : vector<8x8xf32>
    %54 = arith.truncf %53 : vector<8x8xf32> to vector<8x8xbf16>
    %55 = arith.truncf %36 : vector<8x16xf32> to vector<8x16xbf16>
    %cst_18 = arith.constant dense<0.000000e+00> : vector<8x16xf32>
    %56 = tpu.matmul %54, %55, %cst_18 {dimension_numbers = #tpu.dot_dimension_numbers<[1], [0], [0], [1], [0, 0, 1, 1], [], []>} : vector<8x8xbf16>, vector<8x16xbf16>, vector<8x16xf32> -> vector<8x16xf32>
    %57 = vector.extract_strided_slice %8 {offsets = [0, 32], sizes = [8, 16], strides = [1, 1]} : vector<8x192xf32> to vector<8x16xf32>
    %58 = vector.extract_strided_slice %8 {offsets = [0, 96], sizes = [8, 16], strides = [1, 1]} : vector<8x192xf32> to vector<8x16xf32>
    %59 = vector.extract_strided_slice %8 {offsets = [0, 160], sizes = [8, 16], strides = [1, 1]} : vector<8x192xf32> to vector<8x16xf32>
    %60 = arith.truncf %57 : vector<8x16xf32> to vector<8x16xbf16>
    %61 = arith.truncf %58 : vector<8x16xf32> to vector<8x16xbf16>
    %cst_19 = arith.constant dense<0.000000e+00> : vector<8x8xf32>
    %62 = tpu.matmul %60, %61, %cst_19 {dimension_numbers = #tpu.dot_dimension_numbers<[1], [1], [0], [0], [0, 0, 1, 0], [], []>} : vector<8x16xbf16>, vector<8x16xbf16>, vector<8x8xf32> -> vector<8x8xf32>
    %cst_20 = arith.constant 2.500000e-01 : f32
    %63 = vector.broadcast %cst_20 : f32 to vector<8x8xf32>
    %64 = arith.mulf %62, %63 : vector<8x8xf32>
    %65 = vector.broadcast %10 : vector<1x8xf32> to vector<8x8xf32>
    %66 = arith.addf %64, %65 : vector<8x8xf32>
    %cst_21 = arith.constant dense<0xFF800000> : vector<8xf32>
    %67 = vector.multi_reduction <maximumf>, %66, %cst_21 [1] : vector<8x8xf32> to vector<8xf32>
    %68 = vector.shape_cast %67 : vector<8xf32> to vector<8x1xf32>
    %69 = vector.broadcast %68 : vector<8x1xf32> to vector<8x8xf32>
    %70 = arith.subf %66, %69 : vector<8x8xf32>
    %71 = math.exp %70 : vector<8x8xf32>
    %cst_22 = arith.constant dense<0.000000e+00> : vector<8xf32>
    %72 = vector.multi_reduction <add>, %71, %cst_22 [1] : vector<8x8xf32> to vector<8xf32>
    %73 = vector.shape_cast %72 : vector<8xf32> to vector<8x1xf32>
    %74 = tpu.reciprocal %73 {approx = true} : vector<8x1xf32> -> vector<8x1xf32>
    %75 = vector.broadcast %74 : vector<8x1xf32> to vector<8x8xf32>
    %76 = arith.mulf %71, %75 : vector<8x8xf32>
    %77 = arith.truncf %76 : vector<8x8xf32> to vector<8x8xbf16>
    %78 = arith.truncf %59 : vector<8x16xf32> to vector<8x16xbf16>
    %cst_23 = arith.constant dense<0.000000e+00> : vector<8x16xf32>
    %79 = tpu.matmul %77, %78, %cst_23 {dimension_numbers = #tpu.dot_dimension_numbers<[1], [0], [0], [1], [0, 0, 1, 1], [], []>} : vector<8x8xbf16>, vector<8x16xbf16>, vector<8x16xf32> -> vector<8x16xf32>
    %80 = vector.extract_strided_slice %8 {offsets = [0, 48], sizes = [8, 16], strides = [1, 1]} : vector<8x192xf32> to vector<8x16xf32>
    %81 = vector.extract_strided_slice %8 {offsets = [0, 112], sizes = [8, 16], strides = [1, 1]} : vector<8x192xf32> to vector<8x16xf32>
    %82 = vector.extract_strided_slice %8 {offsets = [0, 176], sizes = [8, 16], strides = [1, 1]} : vector<8x192xf32> to vector<8x16xf32>
    %83 = arith.truncf %80 : vector<8x16xf32> to vector<8x16xbf16>
    %84 = arith.truncf %81 : vector<8x16xf32> to vector<8x16xbf16>
    %cst_24 = arith.constant dense<0.000000e+00> : vector<8x8xf32>
    %85 = tpu.matmul %83, %84, %cst_24 {dimension_numbers = #tpu.dot_dimension_numbers<[1], [1], [0], [0], [0, 0, 1, 0], [], []>} : vector<8x16xbf16>, vector<8x16xbf16>, vector<8x8xf32> -> vector<8x8xf32>
    %cst_25 = arith.constant 2.500000e-01 : f32
    %86 = vector.broadcast %cst_25 : f32 to vector<8x8xf32>
    %87 = arith.mulf %85, %86 : vector<8x8xf32>
    %88 = vector.broadcast %10 : vector<1x8xf32> to vector<8x8xf32>
    %89 = arith.addf %87, %88 : vector<8x8xf32>
    %cst_26 = arith.constant dense<0xFF800000> : vector<8xf32>
    %90 = vector.multi_reduction <maximumf>, %89, %cst_26 [1] : vector<8x8xf32> to vector<8xf32>
    %91 = vector.shape_cast %90 : vector<8xf32> to vector<8x1xf32>
    %92 = vector.broadcast %91 : vector<8x1xf32> to vector<8x8xf32>
    %93 = arith.subf %89, %92 : vector<8x8xf32>
    %94 = math.exp %93 : vector<8x8xf32>
    %cst_27 = arith.constant dense<0.000000e+00> : vector<8xf32>
    %95 = vector.multi_reduction <add>, %94, %cst_27 [1] : vector<8x8xf32> to vector<8xf32>
    %96 = vector.shape_cast %95 : vector<8xf32> to vector<8x1xf32>
    %97 = tpu.reciprocal %96 {approx = true} : vector<8x1xf32> -> vector<8x1xf32>
    %98 = vector.broadcast %97 : vector<8x1xf32> to vector<8x8xf32>
    %99 = arith.mulf %94, %98 : vector<8x8xf32>
    %100 = arith.truncf %99 : vector<8x8xf32> to vector<8x8xbf16>
    %101 = arith.truncf %82 : vector<8x16xf32> to vector<8x16xbf16>
    %cst_28 = arith.constant dense<0.000000e+00> : vector<8x16xf32>
    %102 = tpu.matmul %100, %101, %cst_28 {dimension_numbers = #tpu.dot_dimension_numbers<[1], [0], [0], [1], [0, 0, 1, 1], [], []>} : vector<8x8xbf16>, vector<8x16xbf16>, vector<8x16xf32> -> vector<8x16xf32>
    %103 = tpu.concatenate %33, %56, %79, %102 in 1 : vector<8x16xf32>, vector<8x16xf32>, vector<8x16xf32>, vector<8x16xf32> -> vector<8x64xf32>
    %104 = arith.truncf %103 : vector<8x64xf32> to vector<8x64xbf16>
    %c0_29 = arith.constant 0 : index
    %c0_30 = arith.constant 0 : index
    %105 = vector.load %arg5[%c0_29, %c0_30] : memref<64x64xf32, #tpu.memory_space<vmem>>, vector<64x64xf32>
    %106 = arith.truncf %105 : vector<64x64xf32> to vector<64x64xbf16>
    %cst_31 = arith.constant dense<0.000000e+00> : vector<8x64xf32>
    %107 = tpu.matmul %104, %106, %cst_31 {dimension_numbers = #tpu.dot_dimension_numbers<[1], [0], [0], [1], [0, 0, 1, 1], [], []>} : vector<8x64xbf16>, vector<64x64xbf16>, vector<8x64xf32> -> vector<8x64xf32>
    %c0_32 = arith.constant 0 : index
    %c0_33 = arith.constant 0 : index
    %108 = vector.load %arg6[%c0_32, %c0_33] : memref<1x64xf32, #tpu.memory_space<vmem>>, vector<1x64xf32>
    %109 = vector.broadcast %108 : vector<1x64xf32> to vector<8x64xf32>
    %110 = arith.addf %107, %109 : vector<8x64xf32>
    %111 = arith.addf %1, %110 : vector<8x64xf32>
    %c0_34 = arith.constant 0 : index
    %c0_35 = arith.constant 0 : index
    %112 = vector.load %arg7[%c0_34, %c0_35] : memref<1x64xf32, #tpu.memory_space<vmem>>, vector<1x64xf32>
    %c0_36 = arith.constant 0 : index
    %c0_37 = arith.constant 0 : index
    %113 = vector.load %arg8[%c0_36, %c0_37] : memref<1x64xf32, #tpu.memory_space<vmem>>, vector<1x64xf32>
    %cst_38 = arith.constant dense<0.000000e+00> : vector<8xf32>
    %114 = vector.multi_reduction <add>, %111, %cst_38 [1] : vector<8x64xf32> to vector<8xf32>
    %115 = vector.shape_cast %114 : vector<8xf32> to vector<8x1xf32>
    %cst_39 = arith.constant 6.400000e+01 : f32
    %116 = vector.broadcast %cst_39 : f32 to vector<8x1xf32>
    %117 = arith.divf %115, %116 : vector<8x1xf32>
    %118 = vector.broadcast %117 : vector<8x1xf32> to vector<8x64xf32>
    %119 = arith.subf %111, %118 : vector<8x64xf32>
    %120 = vector.broadcast %117 : vector<8x1xf32> to vector<8x64xf32>
    %121 = arith.subf %111, %120 : vector<8x64xf32>
    %122 = arith.mulf %119, %121 : vector<8x64xf32>
    %cst_40 = arith.constant dense<0.000000e+00> : vector<8xf32>
    %123 = vector.multi_reduction <add>, %122, %cst_40 [1] : vector<8x64xf32> to vector<8xf32>
    %124 = vector.shape_cast %123 : vector<8xf32> to vector<8x1xf32>
    %cst_41 = arith.constant 6.400000e+01 : f32
    %125 = vector.broadcast %cst_41 : f32 to vector<8x1xf32>
    %126 = arith.divf %124, %125 : vector<8x1xf32>
    %127 = vector.broadcast %117 : vector<8x1xf32> to vector<8x64xf32>
    %128 = arith.subf %111, %127 : vector<8x64xf32>
    %cst_42 = arith.constant 9.99999996E-13 : f32
    %129 = vector.broadcast %cst_42 : f32 to vector<8x1xf32>
    %130 = arith.addf %126, %129 : vector<8x1xf32>
    %131 = math.rsqrt %130 : vector<8x1xf32>
    %132 = vector.broadcast %131 : vector<8x1xf32> to vector<8x64xf32>
    %133 = arith.mulf %128, %132 : vector<8x64xf32>
    %134 = vector.broadcast %112 : vector<1x64xf32> to vector<8x64xf32>
    %135 = arith.mulf %133, %134 : vector<8x64xf32>
    %136 = vector.broadcast %113 : vector<1x64xf32> to vector<8x64xf32>
    %137 = arith.addf %135, %136 : vector<8x64xf32>
    %c0_43 = arith.constant 0 : index
    %c0_44 = arith.constant 0 : index
    %c0_45 = arith.constant 0 : index
    %138 = vector.load %arg9[%c0_43, %c0_44, %c0_45] : memref<1x8x64xf32, #tpu.memory_space<vmem>>, vector<1x8x64xf32>
    %139 = vector.shape_cast %138 : vector<1x8x64xf32> to vector<8x64xf32>
    %140 = vector.shape_cast %137 : vector<8x64xf32> to vector<1x8x64xf32>
    tpu.vector_store %arg9[%c0_43, %c0_44, %c0_45], %140 {strides = array<i32>} : memref<1x8x64xf32, #tpu.memory_space<vmem>>, vector<1x8x64xf32>,
    return
  }
  func.func @transform_0(%arg0: i32) -> (i32, i32, i32) {
    %c0_i32 = arith.constant 0 : i32
    %c0_i32_0 = arith.constant 0 : i32
    %c0_i32_1 = arith.constant 0 : i32
    return %arg0, %c0_i32, %c0_i32_0 : i32, i32, i32
  }
  func.func @transform_1(%arg0: i32) -> (i32, i32, i32) {
    %c0_i32 = arith.constant 0 : i32
    %c0_i32_0 = arith.constant 0 : i32
    %c0_i32_1 = arith.constant 0 : i32
    return %arg0, %c0_i32, %c0_i32_0 : i32, i32, i32
  }
  func.func @transform_2(%arg0: i32) -> (i32, i32) {
    %c0_i32 = arith.constant 0 : i32
    %c0_i32_0 = arith.constant 0 : i32
    %c0_i32_1 = arith.constant 0 : i32
    return %c0_i32, %c0_i32_0 : i32, i32
  }
  func.func @transform_3(%arg0: i32) -> (i32, i32) {
    %c0_i32 = arith.constant 0 : i32
    %c0_i32_0 = arith.constant 0 : i32
    %c0_i32_1 = arith.constant 0 : i32
    return %c0_i32, %c0_i32_0 : i32, i32
  }
  func.func @transform_4(%arg0: i32) -> (i32, i32) {
    %c0_i32 = arith.constant 0 : i32
    %c0_i32_0 = arith.constant 0 : i32
    %c0_i32_1 = arith.constant 0 : i32
    return %c0_i32, %c0_i32_0 : i32, i32
  }
  func.func @transform_5(%arg0: i32) -> (i32, i32) {
    %c0_i32 = arith.constant 0 : i32
    %c0_i32_0 = arith.constant 0 : i32
    %c0_i32_1 = arith.constant 0 : i32
    return %c0_i32, %c0_i32_0 : i32, i32
  }
  func.func @transform_6(%arg0: i32) -> (i32, i32) {
    %c0_i32 = arith.constant 0 : i32
    %c0_i32_0 = arith.constant 0 : i32
    %c0_i32_1 = arith.constant 0 : i32
    return %c0_i32, %c0_i32_0 : i32, i32
  }
  func.func @transform_7(%arg0: i32) -> (i32, i32) {
    %c0_i32 = arith.constant 0 : i32
    %c0_i32_0 = arith.constant 0 : i32
    %c0_i32_1 = arith.constant 0 : i32
    return %c0_i32, %c0_i32_0 : i32, i32
  }
  func.func @transform_8(%arg0: i32) -> (i32, i32, i32) {
    %c0_i32 = arith.constant 0 : i32
    %c0_i32_0 = arith.constant 0 : i32
    %c0_i32_1 = arith.constant 0 : i32
    return %arg0, %c0_i32, %c0_i32_0 : i32, i32, i32
  }
}

module attributes {stable_mosaic.version = 11 : i64} {
  func.func @_emb_layernorm_kernel(%arg0: i32, %arg1: memref<1x8x64xf32, #tpu.memory_space<vmem>>, %arg2: memref<1x64xf32, #tpu.memory_space<vmem>>, %arg3: memref<1x64xf32, #tpu.memory_space<vmem>>, %arg4: memref<1x8x64xf32, #tpu.memory_space<vmem>>) attributes {dimension_semantics = [#tpu.dimension_semantics<parallel>], iteration_bounds = array<i64: 2>, scalar_prefetch = 0 : i64, scratch_operands = 0 : i64, tpu.core_type = #tpu.core_type<tc>, window_params = [{transform_indices = @transform_0, window_bounds = array<i64: 1, 8, 64>}, {pipeline_mode = #tpu.pipeline_mode<synchronous>, transform_indices = @transform_1, window_bounds = array<i64: 1, 64>}, {pipeline_mode = #tpu.pipeline_mode<synchronous>, transform_indices = @transform_2, window_bounds = array<i64: 1, 64>}, {transform_indices = @transform_3, window_bounds = array<i64: 1, 8, 64>}]} {
    %c0 = arith.constant 0 : index
    %c0_0 = arith.constant 0 : index
    %c0_1 = arith.constant 0 : index
    %0 = vector.load %arg1[%c0, %c0_0, %c0_1] : memref<1x8x64xf32, #tpu.memory_space<vmem>>, vector<1x8x64xf32>
    %1 = vector.shape_cast %0 : vector<1x8x64xf32> to vector<8x64xf32>
    %c0_2 = arith.constant 0 : index
    %c0_3 = arith.constant 0 : index
    %2 = vector.load %arg2[%c0_2, %c0_3] : memref<1x64xf32, #tpu.memory_space<vmem>>, vector<1x64xf32>
    %c0_4 = arith.constant 0 : index
    %c0_5 = arith.constant 0 : index
    %3 = vector.load %arg3[%c0_4, %c0_5] : memref<1x64xf32, #tpu.memory_space<vmem>>, vector<1x64xf32>
    %cst = arith.constant dense<0.000000e+00> : vector<8xf32>
    %4 = vector.multi_reduction <add>, %1, %cst [1] : vector<8x64xf32> to vector<8xf32>
    %5 = vector.shape_cast %4 : vector<8xf32> to vector<8x1xf32>
    %cst_6 = arith.constant 6.400000e+01 : f32
    %6 = vector.broadcast %cst_6 : f32 to vector<8x1xf32>
    %7 = arith.divf %5, %6 : vector<8x1xf32>
    %8 = vector.broadcast %7 : vector<8x1xf32> to vector<8x64xf32>
    %9 = arith.subf %1, %8 : vector<8x64xf32>
    %10 = vector.broadcast %7 : vector<8x1xf32> to vector<8x64xf32>
    %11 = arith.subf %1, %10 : vector<8x64xf32>
    %12 = arith.mulf %9, %11 : vector<8x64xf32>
    %cst_7 = arith.constant dense<0.000000e+00> : vector<8xf32>
    %13 = vector.multi_reduction <add>, %12, %cst_7 [1] : vector<8x64xf32> to vector<8xf32>
    %14 = vector.shape_cast %13 : vector<8xf32> to vector<8x1xf32>
    %cst_8 = arith.constant 6.400000e+01 : f32
    %15 = vector.broadcast %cst_8 : f32 to vector<8x1xf32>
    %16 = arith.divf %14, %15 : vector<8x1xf32>
    %17 = vector.broadcast %7 : vector<8x1xf32> to vector<8x64xf32>
    %18 = arith.subf %1, %17 : vector<8x64xf32>
    %cst_9 = arith.constant 9.99999996E-13 : f32
    %19 = vector.broadcast %cst_9 : f32 to vector<8x1xf32>
    %20 = arith.addf %16, %19 : vector<8x1xf32>
    %21 = math.rsqrt %20 : vector<8x1xf32>
    %22 = vector.broadcast %21 : vector<8x1xf32> to vector<8x64xf32>
    %23 = arith.mulf %18, %22 : vector<8x64xf32>
    %24 = vector.broadcast %2 : vector<1x64xf32> to vector<8x64xf32>
    %25 = arith.mulf %23, %24 : vector<8x64xf32>
    %26 = vector.broadcast %3 : vector<1x64xf32> to vector<8x64xf32>
    %27 = arith.addf %25, %26 : vector<8x64xf32>
    %c0_10 = arith.constant 0 : index
    %c0_11 = arith.constant 0 : index
    %c0_12 = arith.constant 0 : index
    %28 = vector.load %arg4[%c0_10, %c0_11, %c0_12] : memref<1x8x64xf32, #tpu.memory_space<vmem>>, vector<1x8x64xf32>
    %29 = vector.shape_cast %28 : vector<1x8x64xf32> to vector<8x64xf32>
    %30 = vector.shape_cast %27 : vector<8x64xf32> to vector<1x8x64xf32>
    tpu.vector_store %arg4[%c0_10, %c0_11, %c0_12], %30 {strides = array<i32>} : memref<1x8x64xf32, #tpu.memory_space<vmem>>, vector<1x8x64xf32>,
    return
  }
  func.func @transform_0(%arg0: i32) -> (i32, i32, i32) {
    %c0_i32 = arith.constant 0 : i32
    %c0_i32_0 = arith.constant 0 : i32
    %c0_i32_1 = arith.constant 0 : i32
    return %arg0, %c0_i32, %c0_i32_0 : i32, i32, i32
  }
  func.func @transform_1(%arg0: i32) -> (i32, i32) {
    %c0_i32 = arith.constant 0 : i32
    %c0_i32_0 = arith.constant 0 : i32
    %c0_i32_1 = arith.constant 0 : i32
    return %c0_i32, %c0_i32_0 : i32, i32
  }
  func.func @transform_2(%arg0: i32) -> (i32, i32) {
    %c0_i32 = arith.constant 0 : i32
    %c0_i32_0 = arith.constant 0 : i32
    %c0_i32_1 = arith.constant 0 : i32
    return %c0_i32, %c0_i32_0 : i32, i32
  }
  func.func @transform_3(%arg0: i32) -> (i32, i32, i32) {
    %c0_i32 = arith.constant 0 : i32
    %c0_i32_0 = arith.constant 0 : i32
    %c0_i32_1 = arith.constant 0 : i32
    return %arg0, %c0_i32, %c0_i32_0 : i32, i32, i32
  }
}

module attributes {stable_mosaic.version = 11 : i64} {
  func.func @_ffn_block_kernel(%arg0: i32, %arg1: memref<1x8x64xf32, #tpu.memory_space<vmem>>, %arg2: memref<64x128xf32, #tpu.memory_space<vmem>>, %arg3: memref<1x128xf32, #tpu.memory_space<vmem>>, %arg4: memref<128x64xf32, #tpu.memory_space<vmem>>, %arg5: memref<1x64xf32, #tpu.memory_space<vmem>>, %arg6: memref<1x64xf32, #tpu.memory_space<vmem>>, %arg7: memref<1x64xf32, #tpu.memory_space<vmem>>, %arg8: memref<1x8x64xf32, #tpu.memory_space<vmem>>) attributes {dimension_semantics = [#tpu.dimension_semantics<parallel>], iteration_bounds = array<i64: 2>, scalar_prefetch = 0 : i64, scratch_operands = 0 : i64, tpu.core_type = #tpu.core_type<tc>, window_params = [{transform_indices = @transform_0, window_bounds = array<i64: 1, 8, 64>}, {pipeline_mode = #tpu.pipeline_mode<synchronous>, transform_indices = @transform_1, window_bounds = array<i64: 64, 128>}, {pipeline_mode = #tpu.pipeline_mode<synchronous>, transform_indices = @transform_2, window_bounds = array<i64: 1, 128>}, {pipeline_mode = #tpu.pipeline_mode<synchronous>, transform_indices = @transform_3, window_bounds = array<i64: 128, 64>}, {pipeline_mode = #tpu.pipeline_mode<synchronous>, transform_indices = @transform_4, window_bounds = array<i64: 1, 64>}, {pipeline_mode = #tpu.pipeline_mode<synchronous>, transform_indices = @transform_5, window_bounds = array<i64: 1, 64>}, {pipeline_mode = #tpu.pipeline_mode<synchronous>, transform_indices = @transform_6, window_bounds = array<i64: 1, 64>}, {transform_indices = @transform_7, window_bounds = array<i64: 1, 8, 64>}]} {
    %c0 = arith.constant 0 : index
    %c0_0 = arith.constant 0 : index
    %c0_1 = arith.constant 0 : index
    %0 = vector.load %arg1[%c0, %c0_0, %c0_1] : memref<1x8x64xf32, #tpu.memory_space<vmem>>, vector<1x8x64xf32>
    %1 = vector.shape_cast %0 : vector<1x8x64xf32> to vector<8x64xf32>
    %2 = arith.truncf %1 : vector<8x64xf32> to vector<8x64xbf16>
    %c0_2 = arith.constant 0 : index
    %c0_3 = arith.constant 0 : index
    %3 = vector.load %arg2[%c0_2, %c0_3] : memref<64x128xf32, #tpu.memory_space<vmem>>, vector<64x128xf32>
    %4 = arith.truncf %3 : vector<64x128xf32> to vector<64x128xbf16>
    %cst = arith.constant dense<0.000000e+00> : vector<8x128xf32>
    %5 = tpu.matmul %2, %4, %cst {dimension_numbers = #tpu.dot_dimension_numbers<[1], [0], [0], [1], [0, 0, 1, 1], [], []>} : vector<8x64xbf16>, vector<64x128xbf16>, vector<8x128xf32> -> vector<8x128xf32>
    %c0_4 = arith.constant 0 : index
    %c0_5 = arith.constant 0 : index
    %6 = vector.load %arg3[%c0_4, %c0_5] : memref<1x128xf32, #tpu.memory_space<vmem>>, vector<1x128xf32>
    %7 = vector.broadcast %6 : vector<1x128xf32> to vector<8x128xf32>
    %8 = arith.addf %5, %7 : vector<8x128xf32>
    %cst_6 = arith.constant 5.000000e-01 : f32
    %9 = vector.broadcast %cst_6 : f32 to vector<8x128xf32>
    %10 = arith.mulf %9, %8 : vector<8x128xf32>
    %cst_7 = arith.constant 4.471500e-02 : f32
    %11 = vector.broadcast %cst_7 : f32 to vector<8x128xf32>
    %12 = arith.mulf %11, %8 : vector<8x128xf32>
    %13 = arith.mulf %12, %8 : vector<8x128xf32>
    %14 = arith.mulf %13, %8 : vector<8x128xf32>
    %15 = arith.addf %8, %14 : vector<8x128xf32>
    %cst_8 = arith.constant 0.797884583 : f32
    %16 = vector.broadcast %cst_8 : f32 to vector<8x128xf32>
    %17 = arith.mulf %16, %15 : vector<8x128xf32>
    %18 = math.tanh %17 : vector<8x128xf32>
    %cst_9 = arith.constant 1.000000e+00 : f32
    %19 = vector.broadcast %cst_9 : f32 to vector<8x128xf32>
    %20 = arith.addf %19, %18 : vector<8x128xf32>
    %21 = arith.mulf %10, %20 : vector<8x128xf32>
    %22 = arith.truncf %21 : vector<8x128xf32> to vector<8x128xbf16>
    %c0_10 = arith.constant 0 : index
    %c0_11 = arith.constant 0 : index
    %23 = vector.load %arg4[%c0_10, %c0_11] : memref<128x64xf32, #tpu.memory_space<vmem>>, vector<128x64xf32>
    %24 = arith.truncf %23 : vector<128x64xf32> to vector<128x64xbf16>
    %cst_12 = arith.constant dense<0.000000e+00> : vector<8x64xf32>
    %25 = tpu.matmul %22, %24, %cst_12 {dimension_numbers = #tpu.dot_dimension_numbers<[1], [0], [0], [1], [0, 0, 1, 1], [], []>} : vector<8x128xbf16>, vector<128x64xbf16>, vector<8x64xf32> -> vector<8x64xf32>
    %c0_13 = arith.constant 0 : index
    %c0_14 = arith.constant 0 : index
    %26 = vector.load %arg5[%c0_13, %c0_14] : memref<1x64xf32, #tpu.memory_space<vmem>>, vector<1x64xf32>
    %27 = vector.broadcast %26 : vector<1x64xf32> to vector<8x64xf32>
    %28 = arith.addf %25, %27 : vector<8x64xf32>
    %29 = arith.addf %1, %28 : vector<8x64xf32>
    %c0_15 = arith.constant 0 : index
    %c0_16 = arith.constant 0 : index
    %30 = vector.load %arg6[%c0_15, %c0_16] : memref<1x64xf32, #tpu.memory_space<vmem>>, vector<1x64xf32>
    %c0_17 = arith.constant 0 : index
    %c0_18 = arith.constant 0 : index
    %31 = vector.load %arg7[%c0_17, %c0_18] : memref<1x64xf32, #tpu.memory_space<vmem>>, vector<1x64xf32>
    %cst_19 = arith.constant dense<0.000000e+00> : vector<8xf32>
    %32 = vector.multi_reduction <add>, %29, %cst_19 [1] : vector<8x64xf32> to vector<8xf32>
    %33 = vector.shape_cast %32 : vector<8xf32> to vector<8x1xf32>
    %cst_20 = arith.constant 6.400000e+01 : f32
    %34 = vector.broadcast %cst_20 : f32 to vector<8x1xf32>
    %35 = arith.divf %33, %34 : vector<8x1xf32>
    %36 = vector.broadcast %35 : vector<8x1xf32> to vector<8x64xf32>
    %37 = arith.subf %29, %36 : vector<8x64xf32>
    %38 = vector.broadcast %35 : vector<8x1xf32> to vector<8x64xf32>
    %39 = arith.subf %29, %38 : vector<8x64xf32>
    %40 = arith.mulf %37, %39 : vector<8x64xf32>
    %cst_21 = arith.constant dense<0.000000e+00> : vector<8xf32>
    %41 = vector.multi_reduction <add>, %40, %cst_21 [1] : vector<8x64xf32> to vector<8xf32>
    %42 = vector.shape_cast %41 : vector<8xf32> to vector<8x1xf32>
    %cst_22 = arith.constant 6.400000e+01 : f32
    %43 = vector.broadcast %cst_22 : f32 to vector<8x1xf32>
    %44 = arith.divf %42, %43 : vector<8x1xf32>
    %45 = vector.broadcast %35 : vector<8x1xf32> to vector<8x64xf32>
    %46 = arith.subf %29, %45 : vector<8x64xf32>
    %cst_23 = arith.constant 9.99999996E-13 : f32
    %47 = vector.broadcast %cst_23 : f32 to vector<8x1xf32>
    %48 = arith.addf %44, %47 : vector<8x1xf32>
    %49 = math.rsqrt %48 : vector<8x1xf32>
    %50 = vector.broadcast %49 : vector<8x1xf32> to vector<8x64xf32>
    %51 = arith.mulf %46, %50 : vector<8x64xf32>
    %52 = vector.broadcast %30 : vector<1x64xf32> to vector<8x64xf32>
    %53 = arith.mulf %51, %52 : vector<8x64xf32>
    %54 = vector.broadcast %31 : vector<1x64xf32> to vector<8x64xf32>
    %55 = arith.addf %53, %54 : vector<8x64xf32>
    %c0_24 = arith.constant 0 : index
    %c0_25 = arith.constant 0 : index
    %c0_26 = arith.constant 0 : index
    %56 = vector.load %arg8[%c0_24, %c0_25, %c0_26] : memref<1x8x64xf32, #tpu.memory_space<vmem>>, vector<1x8x64xf32>
    %57 = vector.shape_cast %56 : vector<1x8x64xf32> to vector<8x64xf32>
    %58 = vector.shape_cast %55 : vector<8x64xf32> to vector<1x8x64xf32>
    tpu.vector_store %arg8[%c0_24, %c0_25, %c0_26], %58 {strides = array<i32>} : memref<1x8x64xf32, #tpu.memory_space<vmem>>, vector<1x8x64xf32>,
    return
  }
  func.func @transform_0(%arg0: i32) -> (i32, i32, i32) {
    %c0_i32 = arith.constant 0 : i32
    %c0_i32_0 = arith.constant 0 : i32
    %c0_i32_1 = arith.constant 0 : i32
    return %arg0, %c0_i32, %c0_i32_0 : i32, i32, i32
  }
  func.func @transform_1(%arg0: i32) -> (i32, i32) {
    %c0_i32 = arith.constant 0 : i32
    %c0_i32_0 = arith.constant 0 : i32
    %c0_i32_1 = arith.constant 0 : i32
    return %c0_i32, %c0_i32_0 : i32, i32
  }
  func.func @transform_2(%arg0: i32) -> (i32, i32) {
    %c0_i32 = arith.constant 0 : i32
    %c0_i32_0 = arith.constant 0 : i32
    %c0_i32_1 = arith.constant 0 : i32
    return %c0_i32, %c0_i32_0 : i32, i32
  }
  func.func @transform_3(%arg0: i32) -> (i32, i32) {
    %c0_i32 = arith.constant 0 : i32
    %c0_i32_0 = arith.constant 0 : i32
    %c0_i32_1 = arith.constant 0 : i32
    return %c0_i32, %c0_i32_0 : i32, i32
  }
  func.func @transform_4(%arg0: i32) -> (i32, i32) {
    %c0_i32 = arith.constant 0 : i32
    %c0_i32_0 = arith.constant 0 : i32
    %c0_i32_1 = arith.constant 0 : i32
    return %c0_i32, %c0_i32_0 : i32, i32
  }
  func.func @transform_5(%arg0: i32) -> (i32, i32) {
    %c0_i32 = arith.constant 0 : i32
    %c0_i32_0 = arith.constant 0 : i32
    %c0_i32_1 = arith.constant 0 : i32
    return %c0_i32, %c0_i32_0 : i32, i32
  }
  func.func @transform_6(%arg0: i32) -> (i32, i32) {
    %c0_i32 = arith.constant 0 : i32
    %c0_i32_0 = arith.constant 0 : i32
    %c0_i32_1 = arith.constant 0 : i32
    return %c0_i32, %c0_i32_0 : i32, i32
  }
  func.func @transform_7(%arg0: i32) -> (i32, i32, i32) {
    %c0_i32 = arith.constant 0 : i32
    %c0_i32_0 = arith.constant 0 : i32
    %c0_i32_1 = arith.constant 0 : i32
    return %arg0, %c0_i32, %c0_i32_0 : i32, i32, i32
  }
}

</mosaic_0001>

<llo_original>
// kernel: _lambda_.5
$region0: #{_lambda_.5}
  #allocation0 [shape = 'u32[]', space=smem, size = 0x4, offset = 0x4, fixed_abs, tag = 'smem constant byte address 0x4 - core index']
  #allocation1 [shape = 'u32[72,128]{1,0:T(1,128)}', space=vmem, size = 0x9000, scoped, tag = 'internal scratch']
  %s0 = inlined_call_operand.vmem [shape: f32[2,8,64], index: 0, kind: input, shape index: {}]
  %s1 = inlined_call_operand.vmem [shape: f32[1,64], index: 1, kind: input, shape index: {}]
  %s2 = inlined_call_operand.vmem [shape: f32[1,64], index: 2, kind: input, shape index: {}]
  %s3 = inlined_call_operand.vmem [shape: f32[2,8,64], index: 3, kind: output, shape index: {}]
  %s4 = sld [smem:[#allocation0]]
  $region45: #{_lambda_.5} parent=0
    _
  %s6 = ssub.s32 1, %s4
  %s7 = scalar_select 0, %s6, %s4
  loop: start=0, step=1, limit=4
  $region2: #{_lambda_.5} parent=0 // loop_pre_header
    _
  $region3: #{_lambda_.5} parent=0 // loop_header
    %s9 = sphi 0, %s13
    %p10 = scmp.ge.s32.totalorder %s9, 4
    %s19 = sphi 0, %s21
    %s22 = sphi 0, %s19
    %s23 = sphi 0, %s22
    %s39 = sphi 0, %s23
    %s43 = sphi 0, %s43
    %s45 = sphi 0, %s43
    %s46 = sphi 0, %s45
    %s60 = sphi 0, %s46
    %s64 = sphi 0, %s64
    %s66 = sphi 0, %s64
    %s67 = sphi 0, %s66
    %s81 = sphi 0, %s67
    %s87 = sphi 0, %s89
    %s90 = sphi 0, %s87
    %s91 = sphi 0, %s90
    %s107 = sphi 0, %s91
  $region4: #{_lambda_.5} parent=0 // loop_header_branch
    %12 = sbr.rel (%p10) target = $region8
  $region5: #{_lambda_.5} parent=0 // loop_body
    %s14 = ssub.s32 %s9, 1
    %s15 = ssub.s32 %s9, 2
    %s16 = sadd.s32 %s9, 1
    %s17 = ssub.s32 %s9, %s16
    %p18 = scmp.eq.s32.totalorder %s17, 0
    %s20 = sadd.s32 %s19, 1
    %s21 = scalar_select %p18, %s19, %s20
    %p24 = pneg %p18
    %p25 = scmp.eq.s32.totalorder %s9, 1
    %p26 = por %p24, %p25
    %p27 = scmp.ne.s32.totalorder %s19, %s22
    %p28 = scmp.eq.s32.totalorder %s9, 0
    %p29 = por %p27, %p28
    %p30 = scmp.ne.s32.totalorder %s19, %s22
    %p31 = scmp.eq.s32.totalorder %s14, 1
    %p32 = por %p30, %p31
    %p33 = scmp.ne.s32.totalorder %s22, %s23
    %p34 = scmp.eq.s32.totalorder %s14, 0
    %p35 = por %p33, %p34
    %p36 = scmp.ne.s32.totalorder %s22, %s23
    %p37 = scmp.eq.s32.totalorder %s15, 1
    %p38 = por %p36, %p37
    %p40 = scmp.ne.s32.totalorder %s23, %s39
    %p41 = scmp.eq.s32.totalorder %s15, 0
    %p42 = por %p40, %p41
    %s44 = sadd.s32 %s43, 1
    %p47 = scmp.eq.s32.totalorder %s9, 1
    %p48 = scmp.ne.s32.totalorder %s43, %s45
    %p49 = scmp.eq.s32.totalorder %s9, 0
    %p50 = por %p48, %p49
    %p51 = scmp.ne.s32.totalorder %s43, %s45
    %p52 = scmp.eq.s32.totalorder %s14, 1
    %p53 = por %p51, %p52
    %p54 = scmp.ne.s32.totalorder %s45, %s46
    %p55 = scmp.eq.s32.totalorder %s14, 0
    %p56 = por %p54, %p55
    %p57 = scmp.ne.s32.totalorder %s45, %s46
    %p58 = scmp.eq.s32.totalorder %s15, 1
    %p59 = por %p57, %p58
    %p61 = scmp.ne.s32.totalorder %s46, %s60
    %p62 = scmp.eq.s32.totalorder %s15, 0
    %p63 = por %p61, %p62
    %s65 = sadd.s32 %s64, 1
    %p68 = scmp.eq.s32.totalorder %s9, 1
    %p69 = scmp.ne.s32.totalorder %s64, %s66
    %p70 = scmp.eq.s32.totalorder %s9, 0
    %p71 = por %p69, %p70
    %p72 = scmp.ne.s32.totalorder %s64, %s66
    %p73 = scmp.eq.s32.totalorder %s14, 1
    %p74 = por %p72, %p73
    %p75 = scmp.ne.s32.totalorder %s66, %s67
    %p76 = scmp.eq.s32.totalorder %s14, 0
    %p77 = por %p75, %p76
    %p78 = scmp.ne.s32.totalorder %s66, %s67
    %p79 = scmp.eq.s32.totalorder %s15, 1
    %p80 = por %p78, %p79
    %p82 = scmp.ne.s32.totalorder %s67, %s81
    %p83 = scmp.eq.s32.totalorder %s15, 0
    %p84 = por %p82, %p83
    %s85 = ssub.s32 %s9, %s16
    %p86 = scmp.eq.s32.totalorder %s85, 0
    %s88 = sadd.s32 %s87, 1
    %s89 = scalar_select %p86, %s87, %s88
    %p92 = pneg %p86
    %p93 = scmp.eq.s32.totalorder %s9, 1
    %p94 = por %p92, %p93
    %p95 = scmp.ne.s32.totalorder %s87, %s90
    %p96 = scmp.eq.s32.totalorder %s9, 0
    %p97 = por %p95, %p96
    %p98 = scmp.ne.s32.totalorder %s87, %s90
    %p99 = scmp.eq.s32.totalorder %s14, 1
    %p100 = por %p98, %p99
    %p101 = scmp.ne.s32.totalorder %s90, %s91
    %p102 = scmp.eq.s32.totalorder %s14, 0
    %p103 = por %p101, %p102
    %p104 = scmp.ne.s32.totalorder %s90, %s91
    %p105 = scmp.eq.s32.totalorder %s15, 1
    %p106 = por %p104, %p105
    %p108 = scmp.ne.s32.totalorder %s91, %s107
    %p109 = scmp.eq.s32.totalorder %s15, 0
    %p110 = por %p108, %p109
    %p111 = scmp.le.s32.totalorder 1, %s9
    %p112 = scmp.lt.s32.totalorder %s9, 3
    %p113 = pnand %p111, %p112
    %p114 = pneg %p113
    // Predicated region
    $region9: #{_lambda_.5} parent=5 // pred_check
      _
    $region10: #{_lambda_.5} parent=5 // pred_check_branch
      %116 = sbr.rel (%p113) target = $region12
    $region11: #{_lambda_.5} parent=5 // pred_region
      %s117 = ssub.s32 %s9, 1
      // Predicated region
      $region13: #{_lambda_.5} parent=11 // pred_check
        %p118 = pneg %p56
      $region14: #{_lambda_.5} parent=11 // pred_check_branch
        %120 = sbr.rel (%p118) target = $region16
      $region15: #{_lambda_.5} parent=11 // pred_region
        _
      $region16: #{_lambda_.5} parent=11 // pred_fallthru
        _
      // Predicated region
      $region17: #{_lambda_.5} parent=11 // pred_check
        %p121 = pneg %p77
      $region18: #{_lambda_.5} parent=11 // pred_check_branch
        %123 = sbr.rel (%p121) target = $region20
      $region19: #{_lambda_.5} parent=11 // pred_region
        _
      $region20: #{_lambda_.5} parent=11 // pred_fallthru
        _
    $region12: #{_lambda_.5} parent=5 // pred_fallthru
      _
    %p124 = scmp.lt.s32.totalorder %s9, 2
    // Predicated region
    $region21: #{_lambda_.5} parent=5 // pred_check
      %p125 = pneg %p124
    $region22: #{_lambda_.5} parent=5 // pred_check_branch
      %127 = sbr.rel (%p125) target = $region24
    $region23: #{_lambda_.5} parent=5 // pred_region
      // Predicated region
      $region25: #{_lambda_.5} parent=23 // pred_check
        %p128 = pneg %p29
      $region26: #{_lambda_.5} parent=23 // pred_check_branch
        %130 = sbr.rel (%p128) target = $region28
      $region27: #{_lambda_.5} parent=23 // pred_region
        %p131 = scmp.lt.s32.totalorder %s9, 1
        %s132 = scalar_select %p131, %s9, 1
        %s133 = smul.addr %s132, 8
        %s134 = scalar_lea.vmem %s0, %s133
      $region28: #{_lambda_.5} parent=23 // pred_fallthru
        _
    $region24: #{_lambda_.5} parent=5 // pred_fallthru
      _
    %p135 = scmp.le.s32.totalorder 1, %s9
    %p136 = scmp.lt.s32.totalorder %s9, 3
    %p137 = pnand %p135, %p136
    %p138 = pneg %p137
    // Predicated region
    $region29: #{_lambda_.5} parent=5 // pred_check
      _
    $region30: #{_lambda_.5} parent=5 // pred_check_branch
      %140 = sbr.rel (%p137) target = $region32
    $region31: #{_lambda_.5} parent=5 // pred_region
      %s141 = ssub.s32 %s9, 1
      %p142 = scmp.lt.s32.totalorder %s14, 1
      %s143 = scalar_select %p142, %s14, 1
      %s144 = smul.addr %s143, 8
      %s145 = scalar_lea.vmem %s0, %s144
      %p146 = pneg %p35
      %p147 = pneg %p32
      %p148 = pneg %p56
      %p149 = pneg %p53
      %p150 = pneg %p77
      %p151 = pneg %p74
      %p152 = pneg %p103
      %p153 = pneg %p100
      %p154 = scmp.lt.s32.totalorder %s14, 1
      %s155 = scalar_select %p154, %s14, 1
      %s156 = smul.addr %s155, 8
      %s157 = scalar_lea.vmem %s3, %s156
      %p158 = scmp.lt.s32.totalorder %s14, 1
      %s159 = scalar_select %p158, %s14, 1
      %s160 = smul.addr %s159, 8
      %s161 = scalar_lea.vmem %s0, %s160
      %p162 = scmp.lt.s32.totalorder %s14, 1
      %s163 = scalar_select %p162, %s14, 1
      %s164 = smul.addr %s163, 8
      %s165 = scalar_lea.vmem %s3, %s164
      %v166 = vld [vmem:[%s161] sm:$0xff]
      %v167 = vld [vmem:[%s1] sm:$0x1]
      %v168 = vld [vmem:[%s2] sm:$0x1]
      %vm169 = vcmask 523264
      %v170 = vsel %vm169, %v166, 0.0
      %171 = vadd.xlane.f32.xlu0 %v170
      %v172 = vpop.xlane.xlu0 %171
      %v173 = vrcp.pop 64.0
      %v174 = vmul.f32 64.0, %v173
      %v175 = vsub.f32 1.0, %v174
      %v176 = vmul.f32 %v173, %v175
      %v177 = vadd.f32 %v173, %v176
      %vm178 = vweird.f32 %v173
      %v179 = vsel %vm178, %v173, %v177
      %v180 = vmul.f32 %v172, %v179
      %v181 = vsub.f32 %v166, %v180
      %v182 = vmul.f32 %v181, %v181
      %v183 = vsel %vm169, %v182, 0.0
      %184 = vadd.xlane.f32.xlu0 %v183
      %v185 = vpop.xlane.xlu0 %184
      %v186 = vmul.f32 %v185, %v179
      %v187 = vadd.f32 %v186, 1e-12
      %v188 = vrsqrt.pop %v187
      %v189 = vmul.f32 %v188, %v187
      %v190 = vmul.f32 %v189, %v188
      %v191 = vmul.f32 0.5, %v190
      %v192 = vsub.f32 1.5, %v191
      %v193 = vmul.f32 %v188, %v192
      %vm194 = vweird.f32 %v187
      %vm195 = vweird.f32 %v188
      %vm196 = vmor %vm194, %vm195
      %v197 = vsel %vm196, %v188, %v193
      %v198 = vmul.f32 %v181, %v197
      %v200 = vperm.slane %v167, 0
      %v202 = vmul.f32 %v198, %v200
      %v204 = vperm.slane %v168, 0
      %v206 = vadd.f32 %v202, %v204
      %207 = vst.msk [vmem:[%s165] sm:$0xff] %vm169, %v206
      %p208 = scmp.lt.s32.totalorder %s14, 1
      %s209 = scalar_select %p208, %s14, 1
      %s210 = smul.addr %s209, 8
      %s211 = scalar_lea.vmem %s3, %s210
      // Predicated region
      $region33: #{_lambda_.5} parent=31 // pred_check
        %p212 = pneg %p100
      $region34: #{_lambda_.5} parent=31 // pred_check_branch
        %214 = sbr.rel (%p212) target = $region36
      $region35: #{_lambda_.5} parent=31 // pred_region
        _
      $region36: #{_lambda_.5} parent=31 // pred_fallthru
        _
    $region32: #{_lambda_.5} parent=5 // pred_fallthru
      _
    %p215 = scmp.le.s32.totalorder 2, %s9
    // Predicated region
    $region37: #{_lambda_.5} parent=5 // pred_check
      %p216 = pneg %p215
    $region38: #{_lambda_.5} parent=5 // pred_check_branch
      %218 = sbr.rel (%p216) target = $region40
    $region39: #{_lambda_.5} parent=5 // pred_region
      %s219 = ssub.s32 %s9, 2
      // Predicated region
      $region41: #{_lambda_.5} parent=39 // pred_check
        %p220 = pneg %p106
      $region42: #{_lambda_.5} parent=39 // pred_check_branch
        %222 = sbr.rel (%p220) target = $region44
      $region43: #{_lambda_.5} parent=39 // pred_region
        %p223 = scmp.lt.s32.totalorder %s15, 1
        %s224 = scalar_select %p223, %s15, 1
        %s225 = smul.addr %s224, 8
        %s226 = scalar_lea.vmem %s3, %s225
      $region44: #{_lambda_.5} parent=39 // pred_fallthru
        _
    $region40: #{_lambda_.5} parent=5 // pred_fallthru
      _
  $region6: #{_lambda_.5} parent=0 // loop_footer
    %s13 = sadd.s32 1, %s9
  $region7: #{_lambda_.5} parent=0 // loop_footer_branch
    %8 = sbr.rel target = $region3
  $region8: #{_lambda_.5} parent=0 // loop_exit
    _

// kernel: _lambda_.6
$region0: #{_lambda_.6}
  #allocation0 [shape = 'u32[]', space=smem, size = 0x4, offset = 0x4, fixed_abs, tag = 'smem constant byte address 0x4 - core index']
  #allocation1 [shape = 'u32[72,128]{1,0:T(1,128)}', space=vmem, size = 0x9000, scoped, tag = 'internal scratch']
  %s0 = inlined_call_operand.vmem [shape: f32[2,8,64], index: 0, kind: input, shape index: {}]
  %s1 = inlined_call_operand.vmem [shape: f32[2,1,8], index: 1, kind: input, shape index: {}]
  %s2 = inlined_call_operand.vmem [shape: f32[64,192], index: 2, kind: input, shape index: {}]
  %s3 = inlined_call_operand.vmem [shape: f32[1,192], index: 3, kind: input, shape index: {}]
  %s4 = inlined_call_operand.vmem [shape: f32[64,64], index: 4, kind: input, shape index: {}]
  %s5 = inlined_call_operand.vmem [shape: f32[1,64], index: 5, kind: input, shape index: {}]
  %s6 = inlined_call_operand.vmem [shape: f32[1,64], index: 6, kind: input, shape index: {}]
  %s7 = inlined_call_operand.vmem [shape: f32[1,64], index: 7, kind: input, shape index: {}]
  %s8 = inlined_call_operand.vmem [shape: f32[2,8,64], index: 8, kind: output, shape index: {}]
  %s9 = sld [smem:[#allocation0]]
  $region65: #{_lambda_.6} parent=0
    _
  %s11 = ssub.s32 1, %s9
  %s12 = scalar_select 0, %s11, %s9
  loop: start=0, step=1, limit=4
  $region2: #{_lambda_.6} parent=0 // loop_pre_header
    _
  $region3: #{_lambda_.6} parent=0 // loop_header
    %s14 = sphi 0, %s18
    %p15 = scmp.ge.s32.totalorder %s14, 4
    %s24 = sphi 0, %s26
    %s27 = sphi 0, %s24
    %s28 = sphi 0, %s27
    %s44 = sphi 0, %s28
    %s50 = sphi 0, %s52
    %s53 = sphi 0, %s50
    %s54 = sphi 0, %s53
    %s70 = sphi 0, %s54
    %s74 = sphi 0, %s74
    %s76 = sphi 0, %s74
    %s77 = sphi 0, %s76
    %s91 = sphi 0, %s77
    %s95 = sphi 0, %s95
    %s97 = sphi 0, %s95
    %s98 = sphi 0, %s97
    %s112 = sphi 0, %s98
    %s116 = sphi 0, %s116
    %s118 = sphi 0, %s116
    %s119 = sphi 0, %s118
    %s133 = sphi 0, %s119
    %s137 = sphi 0, %s137
    %s139 = sphi 0, %s137
    %s140 = sphi 0, %s139
    %s154 = sphi 0, %s140
    %s158 = sphi 0, %s158
    %s160 = sphi 0, %s158
    %s161 = sphi 0, %s160
    %s175 = sphi 0, %s161
    %s179 = sphi 0, %s179
    %s181 = sphi 0, %s179
    %s182 = sphi 0, %s181
    %s196 = sphi 0, %s182
    %s202 = sphi 0, %s204
    %s205 = sphi 0, %s202
    %s206 = sphi 0, %s205
    %s222 = sphi 0, %s206
  $region4: #{_lambda_.6} parent=0 // loop_header_branch
    %17 = sbr.rel (%p15) target = $region8
  $region5: #{_lambda_.6} parent=0 // loop_body
    %s19 = ssub.s32 %s14, 1
    %s20 = ssub.s32 %s14, 2
    %s21 = sadd.s32 %s14, 1
    %s22 = ssub.s32 %s14, %s21
    %p23 = scmp.eq.s32.totalorder %s22, 0
    %s25 = sadd.s32 %s24, 1
    %s26 = scalar_select %p23, %s24, %s25
    %p29 = pneg %p23
    %p30 = scmp.eq.s32.totalorder %s14, 1
    %p31 = por %p29, %p30
    %p32 = scmp.ne.s32.totalorder %s24, %s27
    %p33 = scmp.eq.s32.totalorder %s14, 0
    %p34 = por %p32, %p33
    %p35 = scmp.ne.s32.totalorder %s24, %s27
    %p36 = scmp.eq.s32.totalorder %s19, 1
    %p37 = por %p35, %p36
    %p38 = scmp.ne.s32.totalorder %s27, %s28
    %p39 = scmp.eq.s32.totalorder %s19, 0
    %p40 = por %p38, %p39
    %p41 = scmp.ne.s32.totalorder %s27, %s28
    %p42 = scmp.eq.s32.totalorder %s20, 1
    %p43 = por %p41, %p42
    %p45 = scmp.ne.s32.totalorder %s28, %s44
    %p46 = scmp.eq.s32.totalorder %s20, 0
    %p47 = por %p45, %p46
    %s48 = ssub.s32 %s14, %s21
    %p49 = scmp.eq.s32.totalorder %s48, 0
    %s51 = sadd.s32 %s50, 1
    %s52 = scalar_select %p49, %s50, %s51
    %p55 = pneg %p49
    %p56 = scmp.eq.s32.totalorder %s14, 1
    %p57 = por %p55, %p56
    %p58 = scmp.ne.s32.totalorder %s50, %s53
    %p59 = scmp.eq.s32.totalorder %s14, 0
    %p60 = por %p58, %p59
    %p61 = scmp.ne.s32.totalorder %s50, %s53
    %p62 = scmp.eq.s32.totalorder %s19, 1
    %p63 = por %p61, %p62
    %p64 = scmp.ne.s32.totalorder %s53, %s54
    %p65 = scmp.eq.s32.totalorder %s19, 0
    %p66 = por %p64, %p65
    %p67 = scmp.ne.s32.totalorder %s53, %s54
    %p68 = scmp.eq.s32.totalorder %s20, 1
    %p69 = por %p67, %p68
    %p71 = scmp.ne.s32.totalorder %s54, %s70
    %p72 = scmp.eq.s32.totalorder %s20, 0
    %p73 = por %p71, %p72
    %s75 = sadd.s32 %s74, 1
    %p78 = scmp.eq.s32.totalorder %s14, 1
    %p79 = scmp.ne.s32.totalorder %s74, %s76
    %p80 = scmp.eq.s32.totalorder %s14, 0
    %p81 = por %p79, %p80
    %p82 = scmp.ne.s32.totalorder %s74, %s76
    %p83 = scmp.eq.s32.totalorder %s19, 1
    %p84 = por %p82, %p83
    %p85 = scmp.ne.s32.totalorder %s76, %s77
    %p86 = scmp.eq.s32.totalorder %s19, 0
    %p87 = por %p85, %p86
    %p88 = scmp.ne.s32.totalorder %s76, %s77
    %p89 = scmp.eq.s32.totalorder %s20, 1
    %p90 = por %p88, %p89
    %p92 = scmp.ne.s32.totalorder %s77, %s91
    %p93 = scmp.eq.s32.totalorder %s20, 0
    %p94 = por %p92, %p93
    %s96 = sadd.s32 %s95, 1
    %p99 = scmp.eq.s32.totalorder %s14, 1
    %p100 = scmp.ne.s32.totalorder %s95, %s97
    %p101 = scmp.eq.s32.totalorder %s14, 0
    %p102 = por %p100, %p101
    %p103 = scmp.ne.s32.totalorder %s95, %s97
    %p104 = scmp.eq.s32.totalorder %s19, 1
    %p105 = por %p103, %p104
    %p106 = scmp.ne.s32.totalorder %s97, %s98
    %p107 = scmp.eq.s32.totalorder %s19, 0
    %p108 = por %p106, %p107
    %p109 = scmp.ne.s32.totalorder %s97, %s98
    %p110 = scmp.eq.s32.totalorder %s20, 1
    %p111 = por %p109, %p110
    %p113 = scmp.ne.s32.totalorder %s98, %s112
    %p114 = scmp.eq.s32.totalorder %s20, 0
    %p115 = por %p113, %p114
    %s117 = sadd.s32 %s116, 1
    %p120 = scmp.eq.s32.totalorder %s14, 1
    %p121 = scmp.ne.s32.totalorder %s116, %s118
    %p122 = scmp.eq.s32.totalorder %s14, 0
    %p123 = por %p121, %p122
    %p124 = scmp.ne.s32.totalorder %s116, %s118
    %p125 = scmp.eq.s32.totalorder %s19, 1
    %p126 = por %p124, %p125
    %p127 = scmp.ne.s32.totalorder %s118, %s119
    %p128 = scmp.eq.s32.totalorder %s19, 0
    %p129 = por %p127, %p128
    %p130 = scmp.ne.s32.totalorder %s118, %s119
    %p131 = scmp.eq.s32.totalorder %s20, 1
    %p132 = por %p130, %p131
    %p134 = scmp.ne.s32.totalorder %s119, %s133
    %p135 = scmp.eq.s32.totalorder %s20, 0
    %p136 = por %p134, %p135
    %s138 = sadd.s32 %s137, 1
    %p141 = scmp.eq.s32.totalorder %s14, 1
    %p142 = scmp.ne.s32.totalorder %s137, %s139
    %p143 = scmp.eq.s32.totalorder %s14, 0
    %p144 = por %p142, %p143
    %p145 = scmp.ne.s32.totalorder %s137, %s139
    %p146 = scmp.eq.s32.totalorder %s19, 1
    %p147 = por %p145, %p146
    %p148 = scmp.ne.s32.totalorder %s139, %s140
    %p149 = scmp.eq.s32.totalorder %s19, 0
    %p150 = por %p148, %p149
    %p151 = scmp.ne.s32.totalorder %s139, %s140
    %p152 = scmp.eq.s32.totalorder %s20, 1
    %p153 = por %p151, %p152
    %p155 = scmp.ne.s32.totalorder %s140, %s154
    %p156 = scmp.eq.s32.totalorder %s20, 0
    %p157 = por %p155, %p156
    %s159 = sadd.s32 %s158, 1
    %p162 = scmp.eq.s32.totalorder %s14, 1
    %p163 = scmp.ne.s32.totalorder %s158, %s160
    %p164 = scmp.eq.s32.totalorder %s14, 0
    %p165 = por %p163, %p164
    %p166 = scmp.ne.s32.totalorder %s158, %s160
    %p167 = scmp.eq.s32.totalorder %s19, 1
    %p168 = por %p166, %p167
    %p169 = scmp.ne.s32.totalorder %s160, %s161
    %p170 = scmp.eq.s32.totalorder %s19, 0
    %p171 = por %p169, %p170
    %p172 = scmp.ne.s32.totalorder %s160, %s161
    %p173 = scmp.eq.s32.totalorder %s20, 1
    %p174 = por %p172, %p173
    %p176 = scmp.ne.s32.totalorder %s161, %s175
    %p177 = scmp.eq.s32.totalorder %s20, 0
    %p178 = por %p176, %p177
    %s180 = sadd.s32 %s179, 1
    %p183 = scmp.eq.s32.totalorder %s14, 1
    %p184 = scmp.ne.s32.totalorder %s179, %s181
    %p185 = scmp.eq.s32.totalorder %s14, 0
    %p186 = por %p184, %p185
    %p187 = scmp.ne.s32.totalorder %s179, %s181
    %p188 = scmp.eq.s32.totalorder %s19, 1
    %p189 = por %p187, %p188
    %p190 = scmp.ne.s32.totalorder %s181, %s182
    %p191 = scmp.eq.s32.totalorder %s19, 0
    %p192 = por %p190, %p191
    %p193 = scmp.ne.s32.totalorder %s181, %s182
    %p194 = scmp.eq.s32.totalorder %s20, 1
    %p195 = por %p193, %p194
    %p197 = scmp.ne.s32.totalorder %s182, %s196
    %p198 = scmp.eq.s32.totalorder %s20, 0
    %p199 = por %p197, %p198
    %s200 = ssub.s32 %s14, %s21
    %p201 = scmp.eq.s32.totalorder %s200, 0
    %s203 = sadd.s32 %s202, 1
    %s204 = scalar_select %p201, %s202, %s203
    %p207 = pneg %p201
    %p208 = scmp.eq.s32.totalorder %s14, 1
    %p209 = por %p207, %p208
    %p210 = scmp.ne.s32.totalorder %s202, %s205
    %p211 = scmp.eq.s32.totalorder %s14, 0
    %p212 = por %p210, %p211
    %p213 = scmp.ne.s32.totalorder %s202, %s205
    %p214 = scmp.eq.s32.totalorder %s19, 1
    %p215 = por %p213, %p214
    %p216 = scmp.ne.s32.totalorder %s205, %s206
    %p217 = scmp.eq.s32.totalorder %s19, 0
    %p218 = por %p216, %p217
    %p219 = scmp.ne.s32.totalorder %s205, %s206
    %p220 = scmp.eq.s32.totalorder %s20, 1
    %p221 = por %p219, %p220
    %p223 = scmp.ne.s32.totalorder %s206, %s222
    %p224 = scmp.eq.s32.totalorder %s20, 0
    %p225 = por %p223, %p224
    %p226 = scmp.le.s32.totalorder 1, %s14
    %p227 = scmp.lt.s32.totalorder %s14, 3
    %p228 = pnand %p226, %p227
    %p229 = pneg %p228
    // Predicated region
    $region9: #{_lambda_.6} parent=5 // pred_check
      _
    $region10: #{_lambda_.6} parent=5 // pred_check_branch
      %231 = sbr.rel (%p228) target = $region12
    $region11: #{_lambda_.6} parent=5 // pred_region
      %s232 = ssub.s32 %s14, 1
      // Predicated region
      $region13: #{_lambda_.6} parent=11 // pred_check
        %p233 = pneg %p87
      $region14: #{_lambda_.6} parent=11 // pred_check_branch
        %235 = sbr.rel (%p233) target = $region16
      $region15: #{_lambda_.6} parent=11 // pred_region
        _
      $region16: #{_lambda_.6} parent=11 // pred_fallthru
        _
      // Predicated region
      $region17: #{_lambda_.6} parent=11 // pred_check
        %p236 = pneg %p108
      $region18: #{_lambda_.6} parent=11 // pred_check_branch
        %238 = sbr.rel (%p236) target = $region20
      $region19: #{_lambda_.6} parent=11 // pred_region
        _
      $region20: #{_lambda_.6} parent=11 // pred_fallthru
        _
      // Predicated region
      $region21: #{_lambda_.6} parent=11 // pred_check
        %p239 = pneg %p129
      $region22: #{_lambda_.6} parent=11 // pred_check_branch
        %241 = sbr.rel (%p239) target = $region24
      $region23: #{_lambda_.6} parent=11 // pred_region
        _
      $region24: #{_lambda_.6} parent=11 // pred_fallthru
        _
      // Predicated region
      $region25: #{_lambda_.6} parent=11 // pred_check
        %p242 = pneg %p150
      $region26: #{_lambda_.6} parent=11 // pred_check_branch
        %244 = sbr.rel (%p242) target = $region28
      $region27: #{_lambda_.6} parent=11 // pred_region
        _
      $region28: #{_lambda_.6} parent=11 // pred_fallthru
        _
      // Predicated region
      $region29: #{_lambda_.6} parent=11 // pred_check
        %p245 = pneg %p171
      $region30: #{_lambda_.6} parent=11 // pred_check_branch
        %247 = sbr.rel (%p245) target = $region32
      $region31: #{_lambda_.6} parent=11 // pred_region
        _
      $region32: #{_lambda_.6} parent=11 // pred_fallthru
        _
      // Predicated region
      $region33: #{_lambda_.6} parent=11 // pred_check
        %p248 = pneg %p192
      $region34: #{_lambda_.6} parent=11 // pred_check_branch
        %250 = sbr.rel (%p248) target = $region36
      $region35: #{_lambda_.6} parent=11 // pred_region
        _
      $region36: #{_lambda_.6} parent=11 // pred_fallthru
        _
    $region12: #{_lambda_.6} parent=5 // pred_fallthru
      _
    %p251 = scmp.lt.s32.totalorder %s14, 2
    // Predicated region
    $region37: #{_lambda_.6} parent=5 // pred_check
      %p252 = pneg %p251
    $region38: #{_lambda_.6} parent=5 // pred_check_branch
      %254 = sbr.rel (%p252) target = $region40
    $region39: #{_lambda_.6} parent=5 // pred_region
      // Predicated region
      $region41: #{_lambda_.6} parent=39 // pred_check
        %p255 = pneg %p34
      $region42: #{_lambda_.6} parent=39 // pred_check_branch
        %257 = sbr.rel (%p255) target = $region44
      $region43: #{_lambda_.6} parent=39 // pred_region
        %p258 = scmp.lt.s32.totalorder %s14, 1
        %s259 = scalar_select %p258, %s14, 1
        %s260 = smul.addr %s259, 8
        %s261 = scalar_lea.vmem %s0, %s260
      $region44: #{_lambda_.6} parent=39 // pred_fallthru
        _
      // Predicated region
      $region45: #{_lambda_.6} parent=39 // pred_check
        %p262 = pneg %p60
      $region46: #{_lambda_.6} parent=39 // pred_check_branch
        %264 = sbr.rel (%p262) target = $region48
      $region47: #{_lambda_.6} parent=39 // pred_region
        %p265 = scmp.lt.s32.totalorder %s14, 1
        %s266 = scalar_select %p265, %s14, 1
        %s267 = scalar_lea.vmem %s1, %s266
      $region48: #{_lambda_.6} parent=39 // pred_fallthru
        _
    $region40: #{_lambda_.6} parent=5 // pred_fallthru
      _
    %p268 = scmp.le.s32.totalorder 1, %s14
    %p269 = scmp.lt.s32.totalorder %s14, 3
    %p270 = pnand %p268, %p269
    %p271 = pneg %p270
    // Predicated region
    $region49: #{_lambda_.6} parent=5 // pred_check
      _
    $region50: #{_lambda_.6} parent=5 // pred_check_branch
      %273 = sbr.rel (%p270) target = $region52
    $region51: #{_lambda_.6} parent=5 // pred_region
      %s274 = ssub.s32 %s14, 1
      %p275 = scmp.lt.s32.totalorder %s19, 1
      %s276 = scalar_select %p275, %s19, 1
      %s277 = smul.addr %s276, 8
      %s278 = scalar_lea.vmem %s0, %s277
      %p279 = pneg %p40
      %p280 = pneg %p37
      %p281 = scmp.lt.s32.totalorder %s19, 1
      %s282 = scalar_select %p281, %s19, 1
      %s283 = scalar_lea.vmem %s1, %s282
      %p284 = pneg %p66
      %p285 = pneg %p63
      %p286 = pneg %p87
      %p287 = pneg %p84
      %p288 = pneg %p108
      %p289 = pneg %p105
      %p290 = pneg %p129
      %p291 = pneg %p126
      %p292 = pneg %p150
      %p293 = pneg %p147
      %p294 = pneg %p171
      %p295 = pneg %p168
      %p296 = pneg %p192
      %p297 = pneg %p189
      %p298 = pneg %p218
      %p299 = pneg %p215
      %p300 = scmp.lt.s32.totalorder %s19, 1
      %s301 = scalar_select %p300, %s19, 1
      %s302 = smul.addr %s301, 8
      %s303 = scalar_lea.vmem %s8, %s302
      %p304 = scmp.lt.s32.totalorder %s19, 1
      %s305 = scalar_select %p304, %s19, 1
      %s306 = smul.addr %s305, 8
      %s307 = scalar_lea.vmem %s0, %s306
      %p308 = scmp.lt.s32.totalorder %s19, 1
      %s309 = scalar_select %p308, %s19, 1
      %s310 = scalar_lea.vmem %s1, %s309
      %p311 = scmp.lt.s32.totalorder %s19, 1
      %s312 = scalar_select %p311, %s19, 1
      %s313 = smul.addr %s312, 8
      %s314 = scalar_lea.vmem %s8, %s313
      %v316 = vld [vmem:[%s307] sm:$0xff]
      %v317 = vpack.c.bf16 %v316, %v316
      %v318 = vld [vmem:[%s2] sm:$0xff]
      %v319 = vld [vmem:[%s2 + $0x8] sm:$0xff]
      %v320 = vld [vmem:[%s2 + $0x10] sm:$0xff]
      %v321 = vld [vmem:[%s2 + $0x18] sm:$0xff]
      %v322 = vld [vmem:[%s2 + $0x20] sm:$0xff]
      %v323 = vld [vmem:[%s2 + $0x28] sm:$0xff]
      %v324 = vld [vmem:[%s2 + $0x30] sm:$0xff]
      %v325 = vld [vmem:[%s2 + $0x38] sm:$0xff]
      %v326 = vld [vmem:[%s2 + $0x40] sm:$0xff]
      %v327 = vld [vmem:[%s2 + $0x48] sm:$0xff]
      %v328 = vld [vmem:[%s2 + $0x50] sm:$0xff]
      %v329 = vld [vmem:[%s2 + $0x58] sm:$0xff]
      %v330 = vld [vmem:[%s2 + $0x60] sm:$0xff]
      %v331 = vld [vmem:[%s2 + $0x68] sm:$0xff]
      %v332 = vld [vmem:[%s2 + $0x70] sm:$0xff]
      %v333 = vld [vmem:[%s2 + $0x78] sm:$0xff]
      %v334 = vpack.c.bf16 %v320, %v318
      %v335 = vpack.c.bf16 %v321, %v319
      %v336 = vpack.c.bf16 %v324, %v322
      %v337 = vpack.c.bf16 %v325, %v323
      %v338 = vpack.c.bf16 %v328, %v326
      %v339 = vpack.c.bf16 %v329, %v327
      %v340 = vpack.c.bf16 %v332, %v330
      %v341 = vpack.c.bf16 %v333, %v331
      %v342 = vld [vmem:[%s3] sm:$0x3]
      %v344 = vperm.slane %v342, 0
      %v345 = vperm.slane %v342, 1
      %vm348 = vcmask 523264
      %v350 = vsel %vm348, %v317, 0
      %352 = vmatpush.bf16.msra.mxu0 0
      %353 = vmatpush.bf16.msra.mxu0 0
      %354 = vmatpush.bf16.msra.mxu0 0
      %355 = vmatpush.bf16.msra.mxu0 0
      %356 = vmatpush.bf16.msra.mxu0 %v340
      %357 = vmatpush.bf16.msra.mxu0 %v338
      %358 = vmatpush.bf16.msra.mxu0 %v336
      %359 = vmatpush.bf16.msra.mxu0 %v334
      %360 = vmatmul.bf16.gmra.mxu0 %v350
      %v361 = vpop.f32.mrf.mxu0
      %v362 = vadd.f32 %v344, %v361
      %v363 = vpop.f32.mrf.mxu0
      %364 = vdwg.mxu0
      %365 = vmatpush.bf16.msra.mxu0 0
      %366 = vmatpush.bf16.msra.mxu0 0
      %367 = vmatpush.bf16.msra.mxu0 0
      %368 = vmatpush.bf16.msra.mxu0 0
      %369 = vmatpush.bf16.msra.mxu0 %v341
      %370 = vmatpush.bf16.msra.mxu0 %v339
      %371 = vmatpush.bf16.msra.mxu0 %v337
      %372 = vmatpush.bf16.msra.mxu0 %v335
      %373 = vmatmul.bf16.gmra.mxu0 %v350
      %v374 = vpop.f32.mrf.mxu0
      %v375 = vadd.f32 %v345, %v374
      %v376 = vpop.f32.mrf.mxu0
      %377 = vdwg.mxu0
      %v378 = vld [vmem:[%s310] sm:$0x1]
      %v379 = vpack.c.bf16 %v362, %v362
      %381 = vrot.lane.b32.xlu0 %v379, 64
      %v382 = vpop.permute.xlu0 %381
      %vm383 = vcmask 130048
      %v385 = vsel %vm383, %v379, 0
      %v388 = vsel %vm383, %v382, 0
      %390 = vmatpush.bf16.xpose.msra.mxu0 0
      %391 = vmatpush.bf16.xpose.msra.mxu0 0
      %392 = vmatpush.bf16.xpose.msra.mxu0 0
      %393 = vmatpush.bf16.xpose.msra.mxu0 0
      %394 = vmatpush.bf16.xpose.msra.mxu0 0
      %395 = vmatpush.bf16.xpose.msra.mxu0 0
      %396 = vmatpush.bf16.xpose.msra.mxu0 0
      %397 = vmatpush.bf16.xpose.msra.mxu0 %v388
      %398 = vmatmul.bf16.gmra.mxu0 %v385
      %v399 = vpop.f32.mrf.mxu0
      %v400 = vadd.f32 0.0, %v399
      %v401 = vpop.f32.mrf.mxu0
      %402 = vdwg.mxu0
      %v403 = vmul.f32 %v400, 0.25
      %v405 = vperm.slane %v378, 0
      %v407 = vadd.f32 %v403, %v405
      %vm408 = vcmask 64512
      %v409 = vsel %vm408, %v407, -inf
      %410 = vmax.xlane.f32.xlu0 %v409
      %v411 = vpop.xlane.xlu0 %410
      %v412 = vsub.f32 %v407, %v411
      %v413 = vmul.f32 %v412, 1.442695
      %v414 = vpow.pop %v413
      %v415 = vsel %vm408, %v414, 0.0
      %416 = vadd.xlane.f32.xlu0 %v415
      %v417 = vpop.xlane.xlu0 %416
      %v418 = vrcp.pop %v417
      %v419 = vmul.f32 %v414, %v418
      %v420 = vpack.c.bf16 %v419, %v419
      %v421 = vpack.c.bf16 %v375, %v375
      %v423 = vsel %vm408, %v420, 0
      %vm425 = vcmask 1043456
      %v427 = vsel %vm425, %v421, 0
      %429 = vmatpush.bf16.msra.mxu0 0
      %430 = vmatpush.bf16.msra.mxu0 0
      %431 = vmatpush.bf16.msra.mxu0 0
      %432 = vmatpush.bf16.msra.mxu0 0
      %433 = vmatpush.bf16.msra.mxu0 0
      %434 = vmatpush.bf16.msra.mxu0 0
      %435 = vmatpush.bf16.msra.mxu0 0
      %436 = vmatpush.bf16.msra.mxu0 %v427
      %437 = vmatmul.bf16.gmra.mxu0 %v423
      %v438 = vpop.f32.mrf.mxu0
      %v439 = vadd.f32 0.0, %v438
      %v440 = vpop.f32.mrf.mxu0
      %441 = vdwg.mxu0
      %442 = vrot.lane.b32.xlu0 %v379, 112
      %v443 = vpop.permute.xlu0 %442
      %444 = vrot.lane.b32.xlu0 %v379, 48
      %v445 = vpop.permute.xlu0 %444
      %v447 = vsel %vm383, %v443, 0
      %v450 = vsel %vm383, %v445, 0
      %452 = vmatpush.bf16.xpose.msra.mxu0 0
      %453 = vmatpush.bf16.xpose.msra.mxu0 0
      %454 = vmatpush.bf16.xpose.msra.mxu0 0
      %455 = vmatpush.bf16.xpose.msra.mxu0 0
      %456 = vmatpush.bf16.xpose.msra.mxu0 0
      %457 = vmatpush.bf16.xpose.msra.mxu0 0
      %458 = vmatpush.bf16.xpose.msra.mxu0 0
      %459 = vmatpush.bf16.xpose.msra.mxu0 %v450
      %460 = vmatmul.bf16.gmra.mxu0 %v447
      %v461 = vpop.f32.mrf.mxu0
      %v462 = vadd.f32 0.0, %v461
      %v463 = vpop.f32.mrf.mxu0
      %464 = vdwg.mxu0
      %v465 = vmul.f32 %v462, 0.25
      %v466 = vadd.f32 %v465, %v405
      %v467 = vsel %vm408, %v466, -inf
      %468 = vmax.xlane.f32.xlu0 %v467
      %v469 = vpop.xlane.xlu0 %468
      %v470 = vsub.f32 %v466, %v469
      %v471 = vmul.f32 %v470, 1.442695
      %v472 = vpow.pop %v471
      %v473 = vsel %vm408, %v472, 0.0
      %474 = vadd.xlane.f32.xlu0 %v473
      %v475 = vpop.xlane.xlu0 %474
      %v476 = vrcp.pop %v475
      %v477 = vmul.f32 %v472, %v476
      %v478 = vpack.c.bf16 %v477, %v477
      %480 = vrot.lane.b32.xlu0 %v421, 112
      %v481 = vpop.permute.xlu0 %480
      %v483 = vsel %vm408, %v478, 0
      %v486 = vsel %vm425, %v481, 0
      %488 = vmatpush.bf16.msra.mxu0 0
      %489 = vmatpush.bf16.msra.mxu0 0
      %490 = vmatpush.bf16.msra.mxu0 0
      %491 = vmatpush.bf16.msra.mxu0 0
      %492 = vmatpush.bf16.msra.mxu0 0
      %493 = vmatpush.bf16.msra.mxu0 0
      %494 = vmatpush.bf16.msra.mxu0 0
      %495 = vmatpush.bf16.msra.mxu0 %v486
      %496 = vmatmul.bf16.gmra.mxu0 %v483
      %v497 = vpop.f32.mrf.mxu0
      %v498 = vadd.f32 0.0, %v497
      %v499 = vpop.f32.mrf.mxu0
      %500 = vdwg.mxu0
      %501 = vrot.lane.b32.xlu0 %v379, 96
      %v502 = vpop.permute.xlu0 %501
      %503 = vrot.lane.b32.xlu0 %v379, 32
      %v504 = vpop.permute.xlu0 %503
      %v506 = vsel %vm383, %v502, 0
      %v509 = vsel %vm383, %v504, 0
      %511 = vmatpush.bf16.xpose.msra.mxu0 0
      %512 = vmatpush.bf16.xpose.msra.mxu0 0
      %513 = vmatpush.bf16.xpose.msra.mxu0 0
      %514 = vmatpush.bf16.xpose.msra.mxu0 0
      %515 = vmatpush.bf16.xpose.msra.mxu0 0
      %516 = vmatpush.bf16.xpose.msra.mxu0 0
      %517 = vmatpush.bf16.xpose.msra.mxu0 0
      %518 = vmatpush.bf16.xpose.msra.mxu0 %v509
      %519 = vmatmul.bf16.gmra.mxu0 %v506
      %v520 = vpop.f32.mrf.mxu0
      %v521 = vadd.f32 0.0, %v520
      %v522 = vpop.f32.mrf.mxu0
      %523 = vdwg.mxu0
      %v524 = vmul.f32 %v521, 0.25
      %v525 = vadd.f32 %v524, %v405
      %v526 = vsel %vm408, %v525, -inf
      %527 = vmax.xlane.f32.xlu0 %v526
      %v528 = vpop.xlane.xlu0 %527
      %v529 = vsub.f32 %v525, %v528
      %v530 = vmul.f32 %v529, 1.442695
      %v531 = vpow.pop %v530
      %v532 = vsel %vm408, %v531, 0.0
      %533 = vadd.xlane.f32.xlu0 %v532
      %v534 = vpop.xlane.xlu0 %533
      %v535 = vrcp.pop %v534
      %v536 = vmul.f32 %v531, %v535
      %v537 = vpack.c.bf16 %v536, %v536
      %538 = vrot.lane.b32.xlu0 %v421, 96
      %v539 = vpop.permute.xlu0 %538
      %v541 = vsel %vm408, %v537, 0
      %v544 = vsel %vm425, %v539, 0
      %546 = vmatpush.bf16.msra.mxu0 0
      %547 = vmatpush.bf16.msra.mxu0 0
      %548 = vmatpush.bf16.msra.mxu0 0
      %549 = vmatpush.bf16.msra.mxu0 0
      %550 = vmatpush.bf16.msra.mxu0 0
      %551 = vmatpush.bf16.msra.mxu0 0
      %552 = vmatpush.bf16.msra.mxu0 0
      %553 = vmatpush.bf16.msra.mxu0 %v544
      %554 = vmatmul.bf16.gmra.mxu0 %v541
      %v555 = vpop.f32.mrf.mxu0
      %v556 = vadd.f32 0.0, %v555
      %v557 = vpop.f32.mrf.mxu0
      %558 = vdwg.mxu0
      %559 = vrot.lane.b32.xlu0 %v379, 80
      %v560 = vpop.permute.xlu0 %559
      %561 = vrot.lane.b32.xlu0 %v379, 16
      %v562 = vpop.permute.xlu0 %561
      %v564 = vsel %vm383, %v560, 0
      %v567 = vsel %vm383, %v562, 0
      %569 = vmatpush.bf16.xpose.msra.mxu0 0
      %570 = vmatpush.bf16.xpose.msra.mxu0 0
      %571 = vmatpush.bf16.xpose.msra.mxu0 0
      %572 = vmatpush.bf16.xpose.msra.mxu0 0
      %573 = vmatpush.bf16.xpose.msra.mxu0 0
      %574 = vmatpush.bf16.xpose.msra.mxu0 0
      %575 = vmatpush.bf16.xpose.msra.mxu0 0
      %576 = vmatpush.bf16.xpose.msra.mxu0 %v567
      %577 = vmatmul.bf16.gmra.mxu0 %v564
      %v578 = vpop.f32.mrf.mxu0
      %v579 = vadd.f32 0.0, %v578
      %v580 = vpop.f32.mrf.mxu0
      %581 = vdwg.mxu0
      %v582 = vmul.f32 %v579, 0.25
      %v583 = vadd.f32 %v582, %v405
      %v584 = vsel %vm408, %v583, -inf
      %585 = vmax.xlane.f32.xlu0 %v584
      %v586 = vpop.xlane.xlu0 %585
      %v587 = vsub.f32 %v583, %v586
      %v588 = vmul.f32 %v587, 1.442695
      %v589 = vpow.pop %v588
      %v590 = vsel %vm408, %v589, 0.0
      %591 = vadd.xlane.f32.xlu0 %v590
      %v592 = vpop.xlane.xlu0 %591
      %v593 = vrcp.pop %v592
      %v594 = vmul.f32 %v589, %v593
      %v595 = vpack.c.bf16 %v594, %v594
      %596 = vrot.lane.b32.xlu0 %v421, 80
      %v597 = vpop.permute.xlu0 %596
      %v599 = vsel %vm408, %v595, 0
      %v602 = vsel %vm425, %v597, 0
      %604 = vmatpush.bf16.msra.mxu0 0
      %605 = vmatpush.bf16.msra.mxu0 0
      %606 = vmatpush.bf16.msra.mxu0 0
      %607 = vmatpush.bf16.msra.mxu0 0
      %608 = vmatpush.bf16.msra.mxu0 0
      %609 = vmatpush.bf16.msra.mxu0 0
      %610 = vmatpush.bf16.msra.mxu0 0
      %611 = vmatpush.bf16.msra.mxu0 %v602
      %612 = vmatmul.bf16.gmra.mxu0 %v599
      %v613 = vpop.f32.mrf.mxu0
      %v614 = vadd.f32 0.0, %v613
      %v615 = vpop.f32.mrf.mxu0
      %616 = vdwg.mxu0
      %618 = vrot.lane.b32.xlu0 %v498, 16
      %v619 = vpop.permute.xlu0 %618
      %622 = vrot.lane.b32.xlu0 %v556, 32
      %v623 = vpop.permute.xlu0 %622
      %626 = vrot.lane.b32.xlu0 %v614, 48
      %v627 = vpop.permute.xlu0 %626
      %v629 = vsel %vm383, %v439, %v619
      %vm630 = vcmask 261120
      %v631 = vsel %vm630, %v629, %v623
      %vm632 = vcmask 392192
      %v633 = vsel %vm632, %v631, %v627
      %v634 = vpack.c.bf16 %v633, %v633
      %v635 = vld [vmem:[%s4] sm:$0xff]
      %v636 = vld [vmem:[%s4 + $0x8] sm:$0xff]
      %v637 = vld [vmem:[%s4 + $0x10] sm:$0xff]
      %v638 = vld [vmem:[%s4 + $0x18] sm:$0xff]
      %v639 = vld [vmem:[%s4 + $0x20] sm:$0xff]
      %v640 = vld [vmem:[%s4 + $0x28] sm:$0xff]
      %v641 = vld [vmem:[%s4 + $0x30] sm:$0xff]
      %v642 = vld [vmem:[%s4 + $0x38] sm:$0xff]
      %v643 = vpack.c.bf16 %v636, %v635
      %v644 = vpack.c.bf16 %v638, %v637
      %v645 = vpack.c.bf16 %v640, %v639
      %v646 = vpack.c.bf16 %v642, %v641
      %v647 = vld [vmem:[%s5] sm:$0x1]
      %v649 = vperm.slane %v647, 0
      %v652 = vsel %vm348, %v634, 0
      %654 = vmatpush.bf16.msra.mxu0 0
      %655 = vmatpush.bf16.msra.mxu0 0
      %656 = vmatpush.bf16.msra.mxu0 0
      %657 = vmatpush.bf16.msra.mxu0 0
      %658 = vmatpush.bf16.msra.mxu0 %v646
      %659 = vmatpush.bf16.msra.mxu0 %v645
      %660 = vmatpush.bf16.msra.mxu0 %v644
      %661 = vmatpush.bf16.msra.mxu0 %v643
      %662 = vmatmul.bf16.gmra.mxu0 %v652
      %v663 = vpop.f32.mrf.mxu0
      %v664 = vadd.f32 %v649, %v663
      %v665 = vpop.f32.mrf.mxu0
      %666 = vdwg.mxu0
      %v667 = vadd.f32 %v316, %v664
      %v668 = vld [vmem:[%s6] sm:$0x1]
      %v669 = vld [vmem:[%s7] sm:$0x1]
      %v670 = vsel %vm348, %v667, 0.0
      %671 = vadd.xlane.f32.xlu0 %v670
      %v672 = vpop.xlane.xlu0 %671
      %v673 = vrcp.pop 64.0
      %v674 = vmul.f32 64.0, %v673
      %v675 = vsub.f32 1.0, %v674
      %v676 = vmul.f32 %v673, %v675
      %v677 = vadd.f32 %v673, %v676
      %vm678 = vweird.f32 %v673
      %v679 = vsel %vm678, %v673, %v677
      %v680 = vmul.f32 %v672, %v679
      %v681 = vsub.f32 %v667, %v680
      %v682 = vmul.f32 %v681, %v681
      %v683 = vsel %vm348, %v682, 0.0
      %684 = vadd.xlane.f32.xlu0 %v683
      %v685 = vpop.xlane.xlu0 %684
      %v686 = vmul.f32 %v685, %v679
      %v687 = vadd.f32 %v686, 1e-12
      %v688 = vrsqrt.pop %v687
      %v689 = vmul.f32 %v688, %v687
      %v690 = vmul.f32 %v689, %v688
      %v691 = vmul.f32 0.5, %v690
      %v692 = vsub.f32 1.5, %v691
      %v693 = vmul.f32 %v688, %v692
      %vm694 = vweird.f32 %v687
      %vm695 = vweird.f32 %v688
      %vm696 = vmor %vm694, %vm695
      %v697 = vsel %vm696, %v688, %v693
      %v698 = vmul.f32 %v681, %v697
      %v700 = vperm.slane %v668, 0
      %v702 = vmul.f32 %v698, %v700
      %v704 = vperm.slane %v669, 0
      %v706 = vadd.f32 %v702, %v704
      %707 = vst.msk [vmem:[%s314] sm:$0xff] %vm348, %v706
      %p708 = scmp.lt.s32.totalorder %s19, 1
      %s709 = scalar_select %p708, %s19, 1
      %s710 = smul.addr %s709, 8
      %s711 = scalar_lea.vmem %s8, %s710
      // Predicated region
      $region53: #{_lambda_.6} parent=51 // pred_check
        %p712 = pneg %p215
      $region54: #{_lambda_.6} parent=51 // pred_check_branch
        %714 = sbr.rel (%p712) target = $region56
      $region55: #{_lambda_.6} parent=51 // pred_region
        _
      $region56: #{_lambda_.6} parent=51 // pred_fallthru
        _
    $region52: #{_lambda_.6} parent=5 // pred_fallthru
      _
    %p715 = scmp.le.s32.totalorder 2, %s14
    // Predicated region
    $region57: #{_lambda_.6} parent=5 // pred_check
      %p716 = pneg %p715
    $region58: #{_lambda_.6} parent=5 // pred_check_branch
      %718 = sbr.rel (%p716) target = $region60
    $region59: #{_lambda_.6} parent=5 // pred_region
      %s719 = ssub.s32 %s14, 2
      // Predicated region
      $region61: #{_lambda_.6} parent=59 // pred_check
        %p720 = pneg %p221
      $region62: #{_lambda_.6} parent=59 // pred_check_branch
        %722 = sbr.rel (%p720) target = $region64
      $region63: #{_lambda_.6} parent=59 // pred_region
        %p723 = scmp.lt.s32.totalorder %s20, 1
        %s724 = scalar_select %p723, %s20, 1
        %s725 = smul.addr %s724, 8
        %s726 = scalar_lea.vmem %s8, %s725
      $region64: #{_lambda_.6} parent=59 // pred_fallthru
        _
    $region60: #{_lambda_.6} parent=5 // pred_fallthru
      _
  $region6: #{_lambda_.6} parent=0 // loop_footer
    %s18 = sadd.s32 1, %s14
  $region7: #{_lambda_.6} parent=0 // loop_footer_branch
    %13 = sbr.rel target = $region3
  $region8: #{_lambda_.6} parent=0 // loop_exit
    _

// kernel: _lambda_.7
$region0: #{_lambda_.7}
  #allocation0 [shape = 'u32[]', space=smem, size = 0x4, offset = 0x4, fixed_abs, tag = 'smem constant byte address 0x4 - core index']
  #allocation1 [shape = 'u32[72,128]{1,0:T(1,128)}', space=vmem, size = 0x9000, scoped, tag = 'internal scratch']
  %s0 = inlined_call_operand.vmem [shape: f32[2,8,64], index: 0, kind: input, shape index: {}]
  %s1 = inlined_call_operand.vmem [shape: f32[64,128], index: 1, kind: input, shape index: {}]
  %s2 = inlined_call_operand.vmem [shape: f32[1,128], index: 2, kind: input, shape index: {}]
  %s3 = inlined_call_operand.vmem [shape: f32[128,64], index: 3, kind: input, shape index: {}]
  %s4 = inlined_call_operand.vmem [shape: f32[1,64], index: 4, kind: input, shape index: {}]
  %s5 = inlined_call_operand.vmem [shape: f32[1,64], index: 5, kind: input, shape index: {}]
  %s6 = inlined_call_operand.vmem [shape: f32[1,64], index: 6, kind: input, shape index: {}]
  %s7 = inlined_call_operand.vmem [shape: f32[2,8,64], index: 7, kind: output, shape index: {}]
  %s8 = sld [smem:[#allocation0]]
  $region61: #{_lambda_.7} parent=0
    _
  %s10 = ssub.s32 1, %s8
  %s11 = scalar_select 0, %s10, %s8
  loop: start=0, step=1, limit=4
  $region2: #{_lambda_.7} parent=0 // loop_pre_header
    _
  $region3: #{_lambda_.7} parent=0 // loop_header
    %s13 = sphi 0, %s17
    %p14 = scmp.ge.s32.totalorder %s13, 4
    %s23 = sphi 0, %s25
    %s26 = sphi 0, %s23
    %s27 = sphi 0, %s26
    %s43 = sphi 0, %s27
    %s47 = sphi 0, %s47
    %s49 = sphi 0, %s47
    %s50 = sphi 0, %s49
    %s64 = sphi 0, %s50
    %s68 = sphi 0, %s68
    %s70 = sphi 0, %s68
    %s71 = sphi 0, %s70
    %s85 = sphi 0, %s71
    %s89 = sphi 0, %s89
    %s91 = sphi 0, %s89
    %s92 = sphi 0, %s91
    %s106 = sphi 0, %s92
    %s110 = sphi 0, %s110
    %s112 = sphi 0, %s110
    %s113 = sphi 0, %s112
    %s127 = sphi 0, %s113
    %s131 = sphi 0, %s131
    %s133 = sphi 0, %s131
    %s134 = sphi 0, %s133
    %s148 = sphi 0, %s134
    %s152 = sphi 0, %s152
    %s154 = sphi 0, %s152
    %s155 = sphi 0, %s154
    %s169 = sphi 0, %s155
    %s175 = sphi 0, %s177
    %s178 = sphi 0, %s175
    %s179 = sphi 0, %s178
    %s195 = sphi 0, %s179
  $region4: #{_lambda_.7} parent=0 // loop_header_branch
    %16 = sbr.rel (%p14) target = $region8
  $region5: #{_lambda_.7} parent=0 // loop_body
    %s18 = ssub.s32 %s13, 1
    %s19 = ssub.s32 %s13, 2
    %s20 = sadd.s32 %s13, 1
    %s21 = ssub.s32 %s13, %s20
    %p22 = scmp.eq.s32.totalorder %s21, 0
    %s24 = sadd.s32 %s23, 1
    %s25 = scalar_select %p22, %s23, %s24
    %p28 = pneg %p22
    %p29 = scmp.eq.s32.totalorder %s13, 1
    %p30 = por %p28, %p29
    %p31 = scmp.ne.s32.totalorder %s23, %s26
    %p32 = scmp.eq.s32.totalorder %s13, 0
    %p33 = por %p31, %p32
    %p34 = scmp.ne.s32.totalorder %s23, %s26
    %p35 = scmp.eq.s32.totalorder %s18, 1
    %p36 = por %p34, %p35
    %p37 = scmp.ne.s32.totalorder %s26, %s27
    %p38 = scmp.eq.s32.totalorder %s18, 0
    %p39 = por %p37, %p38
    %p40 = scmp.ne.s32.totalorder %s26, %s27
    %p41 = scmp.eq.s32.totalorder %s19, 1
    %p42 = por %p40, %p41
    %p44 = scmp.ne.s32.totalorder %s27, %s43
    %p45 = scmp.eq.s32.totalorder %s19, 0
    %p46 = por %p44, %p45
    %s48 = sadd.s32 %s47, 1
    %p51 = scmp.eq.s32.totalorder %s13, 1
    %p52 = scmp.ne.s32.totalorder %s47, %s49
    %p53 = scmp.eq.s32.totalorder %s13, 0
    %p54 = por %p52, %p53
    %p55 = scmp.ne.s32.totalorder %s47, %s49
    %p56 = scmp.eq.s32.totalorder %s18, 1
    %p57 = por %p55, %p56
    %p58 = scmp.ne.s32.totalorder %s49, %s50
    %p59 = scmp.eq.s32.totalorder %s18, 0
    %p60 = por %p58, %p59
    %p61 = scmp.ne.s32.totalorder %s49, %s50
    %p62 = scmp.eq.s32.totalorder %s19, 1
    %p63 = por %p61, %p62
    %p65 = scmp.ne.s32.totalorder %s50, %s64
    %p66 = scmp.eq.s32.totalorder %s19, 0
    %p67 = por %p65, %p66
    %s69 = sadd.s32 %s68, 1
    %p72 = scmp.eq.s32.totalorder %s13, 1
    %p73 = scmp.ne.s32.totalorder %s68, %s70
    %p74 = scmp.eq.s32.totalorder %s13, 0
    %p75 = por %p73, %p74
    %p76 = scmp.ne.s32.totalorder %s68, %s70
    %p77 = scmp.eq.s32.totalorder %s18, 1
    %p78 = por %p76, %p77
    %p79 = scmp.ne.s32.totalorder %s70, %s71
    %p80 = scmp.eq.s32.totalorder %s18, 0
    %p81 = por %p79, %p80
    %p82 = scmp.ne.s32.totalorder %s70, %s71
    %p83 = scmp.eq.s32.totalorder %s19, 1
    %p84 = por %p82, %p83
    %p86 = scmp.ne.s32.totalorder %s71, %s85
    %p87 = scmp.eq.s32.totalorder %s19, 0
    %p88 = por %p86, %p87
    %s90 = sadd.s32 %s89, 1
    %p93 = scmp.eq.s32.totalorder %s13, 1
    %p94 = scmp.ne.s32.totalorder %s89, %s91
    %p95 = scmp.eq.s32.totalorder %s13, 0
    %p96 = por %p94, %p95
    %p97 = scmp.ne.s32.totalorder %s89, %s91
    %p98 = scmp.eq.s32.totalorder %s18, 1
    %p99 = por %p97, %p98
    %p100 = scmp.ne.s32.totalorder %s91, %s92
    %p101 = scmp.eq.s32.totalorder %s18, 0
    %p102 = por %p100, %p101
    %p103 = scmp.ne.s32.totalorder %s91, %s92
    %p104 = scmp.eq.s32.totalorder %s19, 1
    %p105 = por %p103, %p104
    %p107 = scmp.ne.s32.totalorder %s92, %s106
    %p108 = scmp.eq.s32.totalorder %s19, 0
    %p109 = por %p107, %p108
    %s111 = sadd.s32 %s110, 1
    %p114 = scmp.eq.s32.totalorder %s13, 1
    %p115 = scmp.ne.s32.totalorder %s110, %s112
    %p116 = scmp.eq.s32.totalorder %s13, 0
    %p117 = por %p115, %p116
    %p118 = scmp.ne.s32.totalorder %s110, %s112
    %p119 = scmp.eq.s32.totalorder %s18, 1
    %p120 = por %p118, %p119
    %p121 = scmp.ne.s32.totalorder %s112, %s113
    %p122 = scmp.eq.s32.totalorder %s18, 0
    %p123 = por %p121, %p122
    %p124 = scmp.ne.s32.totalorder %s112, %s113
    %p125 = scmp.eq.s32.totalorder %s19, 1
    %p126 = por %p124, %p125
    %p128 = scmp.ne.s32.totalorder %s113, %s127
    %p129 = scmp.eq.s32.totalorder %s19, 0
    %p130 = por %p128, %p129
    %s132 = sadd.s32 %s131, 1
    %p135 = scmp.eq.s32.totalorder %s13, 1
    %p136 = scmp.ne.s32.totalorder %s131, %s133
    %p137 = scmp.eq.s32.totalorder %s13, 0
    %p138 = por %p136, %p137
    %p139 = scmp.ne.s32.totalorder %s131, %s133
    %p140 = scmp.eq.s32.totalorder %s18, 1
    %p141 = por %p139, %p140
    %p142 = scmp.ne.s32.totalorder %s133, %s134
    %p143 = scmp.eq.s32.totalorder %s18, 0
    %p144 = por %p142, %p143
    %p145 = scmp.ne.s32.totalorder %s133, %s134
    %p146 = scmp.eq.s32.totalorder %s19, 1
    %p147 = por %p145, %p146
    %p149 = scmp.ne.s32.totalorder %s134, %s148
    %p150 = scmp.eq.s32.totalorder %s19, 0
    %p151 = por %p149, %p150
    %s153 = sadd.s32 %s152, 1
    %p156 = scmp.eq.s32.totalorder %s13, 1
    %p157 = scmp.ne.s32.totalorder %s152, %s154
    %p158 = scmp.eq.s32.totalorder %s13, 0
    %p159 = por %p157, %p158
    %p160 = scmp.ne.s32.totalorder %s152, %s154
    %p161 = scmp.eq.s32.totalorder %s18, 1
    %p162 = por %p160, %p161
    %p163 = scmp.ne.s32.totalorder %s154, %s155
    %p164 = scmp.eq.s32.totalorder %s18, 0
    %p165 = por %p163, %p164
    %p166 = scmp.ne.s32.totalorder %s154, %s155
    %p167 = scmp.eq.s32.totalorder %s19, 1
    %p168 = por %p166, %p167
    %p170 = scmp.ne.s32.totalorder %s155, %s169
    %p171 = scmp.eq.s32.totalorder %s19, 0
    %p172 = por %p170, %p171
    %s173 = ssub.s32 %s13, %s20
    %p174 = scmp.eq.s32.totalorder %s173, 0
    %s176 = sadd.s32 %s175, 1
    %s177 = scalar_select %p174, %s175, %s176
    %p180 = pneg %p174
    %p181 = scmp.eq.s32.totalorder %s13, 1
    %p182 = por %p180, %p181
    %p183 = scmp.ne.s32.totalorder %s175, %s178
    %p184 = scmp.eq.s32.totalorder %s13, 0
    %p185 = por %p183, %p184
    %p186 = scmp.ne.s32.totalorder %s175, %s178
    %p187 = scmp.eq.s32.totalorder %s18, 1
    %p188 = por %p186, %p187
    %p189 = scmp.ne.s32.totalorder %s178, %s179
    %p190 = scmp.eq.s32.totalorder %s18, 0
    %p191 = por %p189, %p190
    %p192 = scmp.ne.s32.totalorder %s178, %s179
    %p193 = scmp.eq.s32.totalorder %s19, 1
    %p194 = por %p192, %p193
    %p196 = scmp.ne.s32.totalorder %s179, %s195
    %p197 = scmp.eq.s32.totalorder %s19, 0
    %p198 = por %p196, %p197
    %p199 = scmp.le.s32.totalorder 1, %s13
    %p200 = scmp.lt.s32.totalorder %s13, 3
    %p201 = pnand %p199, %p200
    %p202 = pneg %p201
    // Predicated region
    $region9: #{_lambda_.7} parent=5 // pred_check
      _
    $region10: #{_lambda_.7} parent=5 // pred_check_branch
      %204 = sbr.rel (%p201) target = $region12
    $region11: #{_lambda_.7} parent=5 // pred_region
      %s205 = ssub.s32 %s13, 1
      // Predicated region
      $region13: #{_lambda_.7} parent=11 // pred_check
        %p206 = pneg %p60
      $region14: #{_lambda_.7} parent=11 // pred_check_branch
        %208 = sbr.rel (%p206) target = $region16
      $region15: #{_lambda_.7} parent=11 // pred_region
        _
      $region16: #{_lambda_.7} parent=11 // pred_fallthru
        _
      // Predicated region
      $region17: #{_lambda_.7} parent=11 // pred_check
        %p209 = pneg %p81
      $region18: #{_lambda_.7} parent=11 // pred_check_branch
        %211 = sbr.rel (%p209) target = $region20
      $region19: #{_lambda_.7} parent=11 // pred_region
        _
      $region20: #{_lambda_.7} parent=11 // pred_fallthru
        _
      // Predicated region
      $region21: #{_lambda_.7} parent=11 // pred_check
        %p212 = pneg %p102
      $region22: #{_lambda_.7} parent=11 // pred_check_branch
        %214 = sbr.rel (%p212) target = $region24
      $region23: #{_lambda_.7} parent=11 // pred_region
        _
      $region24: #{_lambda_.7} parent=11 // pred_fallthru
        _
      // Predicated region
      $region25: #{_lambda_.7} parent=11 // pred_check
        %p215 = pneg %p123
      $region26: #{_lambda_.7} parent=11 // pred_check_branch
        %217 = sbr.rel (%p215) target = $region28
      $region27: #{_lambda_.7} parent=11 // pred_region
        _
      $region28: #{_lambda_.7} parent=11 // pred_fallthru
        _
      // Predicated region
      $region29: #{_lambda_.7} parent=11 // pred_check
        %p218 = pneg %p144
      $region30: #{_lambda_.7} parent=11 // pred_check_branch
        %220 = sbr.rel (%p218) target = $region32
      $region31: #{_lambda_.7} parent=11 // pred_region
        _
      $region32: #{_lambda_.7} parent=11 // pred_fallthru
        _
      // Predicated region
      $region33: #{_lambda_.7} parent=11 // pred_check
        %p221 = pneg %p165
      $region34: #{_lambda_.7} parent=11 // pred_check_branch
        %223 = sbr.rel (%p221) target = $region36
      $region35: #{_lambda_.7} parent=11 // pred_region
        _
      $region36: #{_lambda_.7} parent=11 // pred_fallthru
        _
    $region12: #{_lambda_.7} parent=5 // pred_fallthru
      _
    %p224 = scmp.lt.s32.totalorder %s13, 2
    // Predicated region
    $region37: #{_lambda_.7} parent=5 // pred_check
      %p225 = pneg %p224
    $region38: #{_lambda_.7} parent=5 // pred_check_branch
      %227 = sbr.rel (%p225) target = $region40
    $region39: #{_lambda_.7} parent=5 // pred_region
      // Predicated region
      $region41: #{_lambda_.7} parent=39 // pred_check
        %p228 = pneg %p33
      $region42: #{_lambda_.7} parent=39 // pred_check_branch
        %230 = sbr.rel (%p228) target = $region44
      $region43: #{_lambda_.7} parent=39 // pred_region
        %p231 = scmp.lt.s32.totalorder %s13, 1
        %s232 = scalar_select %p231, %s13, 1
        %s233 = smul.addr %s232, 8
        %s234 = scalar_lea.vmem %s0, %s233
      $region44: #{_lambda_.7} parent=39 // pred_fallthru
        _
    $region40: #{_lambda_.7} parent=5 // pred_fallthru
      _
    %p235 = scmp.le.s32.totalorder 1, %s13
    %p236 = scmp.lt.s32.totalorder %s13, 3
    %p237 = pnand %p235, %p236
    %p238 = pneg %p237
    // Predicated region
    $region45: #{_lambda_.7} parent=5 // pred_check
      _
    $region46: #{_lambda_.7} parent=5 // pred_check_branch
      %240 = sbr.rel (%p237) target = $region48
    $region47: #{_lambda_.7} parent=5 // pred_region
      %s241 = ssub.s32 %s13, 1
      %p242 = scmp.lt.s32.totalorder %s18, 1
      %s243 = scalar_select %p242, %s18, 1
      %s244 = smul.addr %s243, 8
      %s245 = scalar_lea.vmem %s0, %s244
      %p246 = pneg %p39
      %p247 = pneg %p36
      %p248 = pneg %p60
      %p249 = pneg %p57
      %p250 = pneg %p81
      %p251 = pneg %p78
      %p252 = pneg %p102
      %p253 = pneg %p99
      %p254 = pneg %p123
      %p255 = pneg %p120
      %p256 = pneg %p144
      %p257 = pneg %p141
      %p258 = pneg %p165
      %p259 = pneg %p162
      %p260 = pneg %p191
      %p261 = pneg %p188
      %p262 = scmp.lt.s32.totalorder %s18, 1
      %s263 = scalar_select %p262, %s18, 1
      %s264 = smul.addr %s263, 8
      %s265 = scalar_lea.vmem %s7, %s264
      %p266 = scmp.lt.s32.totalorder %s18, 1
      %s267 = scalar_select %p266, %s18, 1
      %s268 = smul.addr %s267, 8
      %s269 = scalar_lea.vmem %s0, %s268
      %p270 = scmp.lt.s32.totalorder %s18, 1
      %s271 = scalar_select %p270, %s18, 1
      %s272 = smul.addr %s271, 8
      %s273 = scalar_lea.vmem %s7, %s272
      %v275 = vld [vmem:[%s269] sm:$0xff]
      %v276 = vpack.c.bf16 %v275, %v275
      %v277 = vld [vmem:[%s1] sm:$0xff]
      %v278 = vld [vmem:[%s1 + $0x8] sm:$0xff]
      %v279 = vld [vmem:[%s1 + $0x10] sm:$0xff]
      %v280 = vld [vmem:[%s1 + $0x18] sm:$0xff]
      %v281 = vld [vmem:[%s1 + $0x20] sm:$0xff]
      %v282 = vld [vmem:[%s1 + $0x28] sm:$0xff]
      %v283 = vld [vmem:[%s1 + $0x30] sm:$0xff]
      %v284 = vld [vmem:[%s1 + $0x38] sm:$0xff]
      %v285 = vpack.c.bf16 %v278, %v277
      %v286 = vpack.c.bf16 %v280, %v279
      %v287 = vpack.c.bf16 %v282, %v281
      %v288 = vpack.c.bf16 %v284, %v283
      %v289 = vld [vmem:[%s2] sm:$0x1]
      %v291 = vperm.slane %v289, 0
      %vm293 = vcmask 523264
      %v295 = vsel %vm293, %v276, 0
      %297 = vmatpush.bf16.msra.mxu0 0
      %298 = vmatpush.bf16.msra.mxu0 0
      %299 = vmatpush.bf16.msra.mxu0 0
      %300 = vmatpush.bf16.msra.mxu0 0
      %301 = vmatpush.bf16.msra.mxu0 %v288
      %302 = vmatpush.bf16.msra.mxu0 %v287
      %303 = vmatpush.bf16.msra.mxu0 %v286
      %304 = vmatpush.bf16.msra.mxu0 %v285
      %305 = vmatmul.bf16.gmra.mxu0 %v295
      %v306 = vpop.f32.mrf.mxu0
      %v307 = vadd.f32 %v291, %v306
      %v308 = vpop.f32.mrf.mxu0
      %309 = vdwg.mxu0
      %v310 = vmul.f32 %v307, 0.5
      %v311 = vmul.f32 %v307, 0.044715
      %v312 = vmul.f32 %v311, %v307
      %v313 = vmul.f32 %v312, %v307
      %v314 = vadd.f32 %v307, %v313
      %v315 = vmul.f32 %v314, 0.7978846
      %v316 = vtanh.pop %v315
      %v317 = vadd.f32 %v316, 1.0
      %v318 = vmul.f32 %v310, %v317
      %v319 = vpack.c.bf16 %v318, %v318
      %v320 = vld [vmem:[%s3] sm:$0xff]
      %v321 = vld [vmem:[%s3 + $0x8] sm:$0xff]
      %v322 = vld [vmem:[%s3 + $0x10] sm:$0xff]
      %v323 = vld [vmem:[%s3 + $0x18] sm:$0xff]
      %v324 = vld [vmem:[%s3 + $0x20] sm:$0xff]
      %v325 = vld [vmem:[%s3 + $0x28] sm:$0xff]
      %v326 = vld [vmem:[%s3 + $0x30] sm:$0xff]
      %v327 = vld [vmem:[%s3 + $0x38] sm:$0xff]
      %v328 = vld [vmem:[%s3 + $0x40] sm:$0xff]
      %v329 = vld [vmem:[%s3 + $0x48] sm:$0xff]
      %v330 = vld [vmem:[%s3 + $0x50] sm:$0xff]
      %v331 = vld [vmem:[%s3 + $0x58] sm:$0xff]
      %v332 = vld [vmem:[%s3 + $0x60] sm:$0xff]
      %v333 = vld [vmem:[%s3 + $0x68] sm:$0xff]
      %v334 = vld [vmem:[%s3 + $0x70] sm:$0xff]
      %v335 = vld [vmem:[%s3 + $0x78] sm:$0xff]
      %v336 = vpack.c.bf16 %v321, %v320
      %v337 = vpack.c.bf16 %v323, %v322
      %v338 = vpack.c.bf16 %v325, %v324
      %v339 = vpack.c.bf16 %v327, %v326
      %v340 = vpack.c.bf16 %v329, %v328
      %v341 = vpack.c.bf16 %v331, %v330
      %v342 = vpack.c.bf16 %v333, %v332
      %v343 = vpack.c.bf16 %v335, %v334
      %v344 = vld [vmem:[%s4] sm:$0x1]
      %v346 = vperm.slane %v344, 0
      %348 = vmatpush.bf16.msra.mxu0 %v343
      %349 = vmatpush.bf16.msra.mxu0 %v342
      %350 = vmatpush.bf16.msra.mxu0 %v341
      %351 = vmatpush.bf16.msra.mxu0 %v340
      %352 = vmatpush.bf16.msra.mxu0 %v339
      %353 = vmatpush.bf16.msra.mxu0 %v338
      %354 = vmatpush.bf16.msra.mxu0 %v337
      %355 = vmatpush.bf16.msra.mxu0 %v336
      %356 = vmatmul.bf16.gmra.mxu0 %v319
      %v357 = vpop.f32.mrf.mxu0
      %v358 = vadd.f32 %v346, %v357
      %v359 = vpop.f32.mrf.mxu0
      %360 = vdwg.mxu0
      %v361 = vadd.f32 %v275, %v358
      %v362 = vld [vmem:[%s5] sm:$0x1]
      %v363 = vld [vmem:[%s6] sm:$0x1]
      %v364 = vsel %vm293, %v361, 0.0
      %365 = vadd.xlane.f32.xlu0 %v364
      %v366 = vpop.xlane.xlu0 %365
      %v367 = vrcp.pop 64.0
      %v368 = vmul.f32 64.0, %v367
      %v369 = vsub.f32 1.0, %v368
      %v370 = vmul.f32 %v367, %v369
      %v371 = vadd.f32 %v367, %v370
      %vm372 = vweird.f32 %v367
      %v373 = vsel %vm372, %v367, %v371
      %v374 = vmul.f32 %v366, %v373
      %v375 = vsub.f32 %v361, %v374
      %v376 = vmul.f32 %v375, %v375
      %v377 = vsel %vm293, %v376, 0.0
      %378 = vadd.xlane.f32.xlu0 %v377
      %v379 = vpop.xlane.xlu0 %378
      %v380 = vmul.f32 %v379, %v373
      %v381 = vadd.f32 %v380, 1e-12
      %v382 = vrsqrt.pop %v381
      %v383 = vmul.f32 %v382, %v381
      %v384 = vmul.f32 %v383, %v382
      %v385 = vmul.f32 0.5, %v384
      %v386 = vsub.f32 1.5, %v385
      %v387 = vmul.f32 %v382, %v386
      %vm388 = vweird.f32 %v381
      %vm389 = vweird.f32 %v382
      %vm390 = vmor %vm388, %vm389
      %v391 = vsel %vm390, %v382, %v387
      %v392 = vmul.f32 %v375, %v391
      %v394 = vperm.slane %v362, 0
      %v396 = vmul.f32 %v392, %v394
      %v398 = vperm.slane %v363, 0
      %v400 = vadd.f32 %v396, %v398
      %401 = vst.msk [vmem:[%s273] sm:$0xff] %vm293, %v400
      %p402 = scmp.lt.s32.totalorder %s18, 1
      %s403 = scalar_select %p402, %s18, 1
      %s404 = smul.addr %s403, 8
      %s405 = scalar_lea.vmem %s7, %s404
      // Predicated region
      $region49: #{_lambda_.7} parent=47 // pred_check
        %p406 = pneg %p188
      $region50: #{_lambda_.7} parent=47 // pred_check_branch
        %408 = sbr.rel (%p406) target = $region52
      $region51: #{_lambda_.7} parent=47 // pred_region
        _
      $region52: #{_lambda_.7} parent=47 // pred_fallthru
        _
    $region48: #{_lambda_.7} parent=5 // pred_fallthru
      _
    %p409 = scmp.le.s32.totalorder 2, %s13
    // Predicated region
    $region53: #{_lambda_.7} parent=5 // pred_check
      %p410 = pneg %p409
    $region54: #{_lambda_.7} parent=5 // pred_check_branch
      %412 = sbr.rel (%p410) target = $region56
    $region55: #{_lambda_.7} parent=5 // pred_region
      %s413 = ssub.s32 %s13, 2
      // Predicated region
      $region57: #{_lambda_.7} parent=55 // pred_check
        %p414 = pneg %p194
      $region58: #{_lambda_.7} parent=55 // pred_check_branch
        %416 = sbr.rel (%p414) target = $region60
      $region59: #{_lambda_.7} parent=55 // pred_region
        %p417 = scmp.lt.s32.totalorder %s19, 1
        %s418 = scalar_select %p417, %s19, 1
        %s419 = smul.addr %s418, 8
        %s420 = scalar_lea.vmem %s7, %s419
      $region60: #{_lambda_.7} parent=55 // pred_fallthru
        _
    $region56: #{_lambda_.7} parent=5 // pred_fallthru
      _
  $region6: #{_lambda_.7} parent=0 // loop_footer
    %s17 = sadd.s32 1, %s13
  $region7: #{_lambda_.7} parent=0 // loop_footer_branch
    %12 = sbr.rel target = $region3
  $region8: #{_lambda_.7} parent=0 // loop_exit
    _

</llo_original>
